<compile_context>
chip_gen: v6e
topology: v6e:2x2x1
jax: 0.10.0
libtpu: 0.0.40
codegen_flags: <defaults>
</compile_context>

<pallas_src>
import functools
import math

import jax
import jax.numpy as jnp
from jax.experimental import pallas as pl
from jax.experimental.pallas import tpu as pltpu

# ----------------------------------------------------------------------------
# CLIF neuron constants (defaults of CLIFPopulation.__init__)
# ----------------------------------------------------------------------------
DT = 0.1
TAU_S = 10.0          # spike-trace time constant
THRESHOLD = -52.0     # firing threshold
REST_POT = -65.0      # resting potential (also reset value in refractory_and_reset)
REFRAC_LENGTH = 5.0   # refractory period
TC_DECAY = 100.0      # voltage decay time constant
TC_I_DECAY = 2.0      # current decay time constant
LOWER_BOUND = None    # default: no lower bound clamp

# decays computed exactly as compute_decay() does
TRACE_DECAY = math.exp(-DT / TAU_S)
V_DECAY = math.exp(-DT / TC_DECAY)
I_DECAY = math.exp(-DT / TC_I_DECAY)

# population shape (lane/sublane aligned: 32 rows x 128 lanes = 4096 neurons)
POP_ROWS = 32
POP_COLS = 128

# packed-state layout along axis 0 of the (4, R, C) state array
_V, _I, _RC, _TR = 0, 1, 2, 3

# max simulation steps per grid iteration (amortizes per-grid-step overhead)
MAX_CHUNK = 64


def _one_step(x, v, i, rc, tr):
    """One CLIFPopulation.forward() step on vregs (mirrors torch code order)."""
    # ---- compute_potential(x) ----
    v = V_DECAY * (v - REST_POT) + REST_POT
    i = i * I_DECAY + x
    v = jnp.where(rc <= 0.0, v + i, v)      # (refrac_count <= 0) gate, direct select
    # ---- compute_spike() ----
    s = v >= THRESHOLD
    # ---- refractory_and_reset() ----
    rc = rc - DT
    rc = jnp.where(s, REFRAC_LENGTH, rc)
    v = jnp.where(s, REST_POT, v)           # reset to rest_pot (as in the torch code)
    # ---- lower bound clamp (lower_bound is None by default -> skipped) ----
    if LOWER_BOUND is not None:
        v = jnp.where(v < LOWER_BOUND, LOWER_BOUND, v)
    # ---- NeuralPopulation.forward(x): spike trace update ----
    # CLIF default: spike_trace=True, additive_spike_trace=False:
    #   traces *= trace_decay ; traces.masked_fill_(s, 1)
    tr = jnp.where(s, 1.0, tr * TRACE_DECAY)
    # TODO(synk): sum_input=True ('summed += x') not implemented (default is False).
    return v, i, rc, tr, s


# ----------------------------------------------------------------------------
# Pallas kernel: CHUNK fused CLIF simulation steps per grid iteration.
#   x_ref      : (CHUNK, R, C)  input current for this chunk           (streamed)
#   st_in_ref  : (4, R, C)      initial packed state [v, i, rc, tr]    (read at chunk 0)
#   st_out_ref : (4, R, C)      packed state, VMEM-resident across grid (aliased to st_in)
#   s_out_ref  : (CHUNK, R, C)  spikes (0/1 float32) for this chunk    (streamed)
# ----------------------------------------------------------------------------
def clif_chunk_kernel(x_ref, st_in_ref, st_out_ref, s_out_ref, *, chunk):
    c = pl.program_id(0)

    @pl.when(c == 0)
    def _init():
        # Load initial state into the VMEM-resident output block once.
        st_out_ref[...] = st_in_ref[...]

    # State lives in vregs for the whole chunk (one VMEM load / store per chunk).
    v = st_out_ref[_V]
    i = st_out_ref[_I]
    rc = st_out_ref[_RC]
    tr = st_out_ref[_TR]

    # Fully-unrolled inner time loop (chunk is a static Python int).
    for t in range(chunk):
        v, i, rc, tr, s = _one_step(x_ref[t], v, i, rc, tr)
        s_out_ref[t] = s.astype(jnp.float32)   # torch bool `s` returned as 0/1 f32

    st_out_ref[_V] = v
    st_out_ref[_I] = i
    st_out_ref[_RC] = rc
    st_out_ref[_TR] = tr


def _pick_chunk(T):
    """Largest divisor of T that is <= MAX_CHUNK."""
    for c in range(min(T, MAX_CHUNK), 0, -1):
        if T % c == 0:
            return c
    return 1


# ----------------------------------------------------------------------------
# Wrapper: run T fused simulation steps.
#   x_seq  : (T, R, C) float32 input current per step
#   state0 : (4, R, C) float32 packed [v, i, refrac_count, traces]
# Returns (state_T, s_seq) with state_T packed the same way and s_seq (T, R, C).
# NOTE: state0 is donated (aliased into state_T); do not reuse it afterwards.
# ----------------------------------------------------------------------------
def clif_forward_steps(x_seq, state0, chunk=None):
    T, R, C = x_seq.shape
    assert state0.shape == (4, R, C)
    if chunk is None:
        chunk = _pick_chunk(T)
    assert T % chunk == 0
    n_chunks = T // chunk

    kernel = functools.partial(clif_chunk_kernel, chunk=chunk)
    return pl.pallas_call(
        kernel,
        grid=(n_chunks,),
        in_specs=[
            pl.BlockSpec((chunk, R, C), lambda c: (c, 0, 0)),   # x chunk (streamed)
            pl.BlockSpec((4, R, C), lambda c: (0, 0, 0)),       # initial state (fetched once)
        ],
        out_specs=(
            pl.BlockSpec((4, R, C), lambda c: (0, 0, 0)),       # resident state, written at end
            pl.BlockSpec((chunk, R, C), lambda c: (c, 0, 0)),   # s chunk (streamed)
        ),
        out_shape=(
            jax.ShapeDtypeStruct((4, R, C), jnp.float32),
            jax.ShapeDtypeStruct((T, R, C), jnp.float32),
        ),
        # state updates in place: packed state input (arg 1) aliases packed state output 0
        input_output_aliases={1: 0},
        compiler_params=pltpu.CompilerParams(dimension_semantics=("arbitrary",)),
    )(x_seq, state0)


# ----------------------------------------------------------------------------
# Pure-JAX reference (mirrors the PyTorch forward exactly, stepped T times)
# ----------------------------------------------------------------------------
def clif_steps_ref(x_seq, v, i, rc, tr):
    s_list = []
    for t in range(x_seq.shape[0]):
        x = x_seq[t]
        v = V_DECAY * (v - REST_POT) + REST_POT
        i = i * I_DECAY + x
        v = jnp.where(rc <= 0.0, v + i, v)
        s = v >= THRESHOLD
        rc = rc - DT
        rc = jnp.where(s, REFRAC_LENGTH, rc)
        v = jnp.where(s, REST_POT, v)
        tr = jnp.where(s, 1.0, tr * TRACE_DECAY)
        s_list.append(s.astype(jnp.float32))
    return v, i, rc, tr, jnp.stack(s_list)


if __name__ == "__main__":
    key = jax.random.PRNGKey(0)
    T = 16  # fused simulation steps

    # input "current" per step — scaled so some neurons cross threshold
    x_seq = 20.0 * jax.random.uniform(key, (T, POP_ROWS, POP_COLS), dtype=jnp.float32)

    # initial state, as reset_state_variables() / set_batch_size() produce
    v0 = jnp.full((POP_ROWS, POP_COLS), REST_POT, dtype=jnp.float32)
    i0 = jnp.zeros((POP_ROWS, POP_COLS), dtype=jnp.float32)
    rc0 = jnp.zeros((POP_ROWS, POP_COLS), dtype=jnp.float32)
    tr0 = jnp.zeros((POP_ROWS, POP_COLS), dtype=jnp.float32)

    # pure-JAX reference (computed before the kernel since state0 is donated)
    rv, ri, rrc, rtr, rs = clif_steps_ref(x_seq, v0, i0, rc0, tr0)

    # run T fused simulation steps through the Pallas kernel
    state0 = jnp.stack([v0, i0, rc0, tr0])          # (4, R, C) packed state
    state_T, s_seq = clif_forward_steps(x_seq, state0)
    jax.block_until_ready((state_T, s_seq))
    # NOTE: state0 is donated (aliased) to state_T; do not reuse it after this point.

    for got, want in [
        (state_T[_V], rv),
        (state_T[_I], ri),
        (state_T[_RC], rrc),
        (state_T[_TR], rtr),
        (s_seq, rs),
    ]:
        assert jnp.allclose(got, want, atol=1e-5, rtol=1e-5), "mismatch vs reference"

    print("KERNEL_OK")
</pallas_src>

<mosaic_0001>
module attributes {stable_mosaic.version = 11 : i64} {
  func.func @clif_chunk_kernel(%arg0: i32, %arg1: memref<16x32x128xf32, #tpu.memory_space<vmem>>, %arg2: memref<4x32x128xf32, #tpu.memory_space<vmem>>, %arg3: memref<4x32x128xf32, #tpu.memory_space<vmem>>, %arg4: memref<16x32x128xf32, #tpu.memory_space<vmem>>) attributes {dimension_semantics = [#tpu.dimension_semantics<arbitrary>], iteration_bounds = array<i64: 1>, scalar_prefetch = 0 : i64, scratch_operands = 0 : i64, tpu.core_type = #tpu.core_type<tc>, window_params = [{transform_indices = @transform_0, window_bounds = array<i64: 16, 32, 128>}, {pipeline_mode = #tpu.pipeline_mode<synchronous>, transform_indices = @transform_1, window_bounds = array<i64: 4, 32, 128>}, {pipeline_mode = #tpu.pipeline_mode<synchronous>, transform_indices = @transform_2, window_bounds = array<i64: 4, 32, 128>}, {transform_indices = @transform_3, window_bounds = array<i64: 16, 32, 128>}]} {
    %c0_i32 = arith.constant 0 : i32
    %0 = arith.cmpi eq, %arg0, %c0_i32 : i32
    %1 = arith.extui %0 : i1 to i32
    %c0_i32_0 = arith.constant 0 : i32
    %2 = arith.cmpi ne, %1, %c0_i32_0 : i32
    scf.if %2 {
      %c0_280 = arith.constant 0 : index
      %c0_281 = arith.constant 0 : index
      %c0_282 = arith.constant 0 : index
      %535 = vector.load %arg2[%c0_280, %c0_281, %c0_282] : memref<4x32x128xf32, #tpu.memory_space<vmem>>, vector<4x32x128xf32>
      %c0_283 = arith.constant 0 : index
      %c0_284 = arith.constant 0 : index
      %c0_285 = arith.constant 0 : index
      %536 = vector.load %arg3[%c0_283, %c0_284, %c0_285] : memref<4x32x128xf32, #tpu.memory_space<vmem>>, vector<4x32x128xf32>
      tpu.vector_store %arg3[%c0_283, %c0_284, %c0_285], %535 {strides = array<i32>} : memref<4x32x128xf32, #tpu.memory_space<vmem>>, vector<4x32x128xf32>,
    } else {
    }
    %c0 = arith.constant 0 : index
    %c0_1 = arith.constant 0 : index
    %c0_2 = arith.constant 0 : index
    %3 = vector.load %arg3[%c0, %c0_1, %c0_2] : memref<4x32x128xf32, #tpu.memory_space<vmem>>, vector<1x32x128xf32>
    %4 = vector.shape_cast %3 : vector<1x32x128xf32> to vector<32x128xf32>
    %c1 = arith.constant 1 : index
    %c0_3 = arith.constant 0 : index
    %c0_4 = arith.constant 0 : index
    %5 = vector.load %arg3[%c1, %c0_3, %c0_4] : memref<4x32x128xf32, #tpu.memory_space<vmem>>, vector<1x32x128xf32>
    %6 = vector.shape_cast %5 : vector<1x32x128xf32> to vector<32x128xf32>
    %c2 = arith.constant 2 : index
    %c0_5 = arith.constant 0 : index
    %c0_6 = arith.constant 0 : index
    %7 = vector.load %arg3[%c2, %c0_5, %c0_6] : memref<4x32x128xf32, #tpu.memory_space<vmem>>, vector<1x32x128xf32>
    %8 = vector.shape_cast %7 : vector<1x32x128xf32> to vector<32x128xf32>
    %c3 = arith.constant 3 : index
    %c0_7 = arith.constant 0 : index
    %c0_8 = arith.constant 0 : index
    %9 = vector.load %arg3[%c3, %c0_7, %c0_8] : memref<4x32x128xf32, #tpu.memory_space<vmem>>, vector<1x32x128xf32>
    %10 = vector.shape_cast %9 : vector<1x32x128xf32> to vector<32x128xf32>
    %c0_9 = arith.constant 0 : index
    %c0_10 = arith.constant 0 : index
    %c0_11 = arith.constant 0 : index
    %11 = vector.load %arg1[%c0_9, %c0_10, %c0_11] : memref<16x32x128xf32, #tpu.memory_space<vmem>>, vector<1x32x128xf32>
    %12 = vector.shape_cast %11 : vector<1x32x128xf32> to vector<32x128xf32>
    %cst = arith.constant -6.500000e+01 : f32
    %13 = vector.broadcast %cst : f32 to vector<32x128xf32>
    %14 = arith.subf %4, %13 : vector<32x128xf32>
    %cst_12 = arith.constant 0.999000489 : f32
    %15 = vector.broadcast %cst_12 : f32 to vector<32x128xf32>
    %16 = arith.mulf %15, %14 : vector<32x128xf32>
    %cst_13 = arith.constant -6.500000e+01 : f32
    %17 = vector.broadcast %cst_13 : f32 to vector<32x128xf32>
    %18 = arith.addf %16, %17 : vector<32x128xf32>
    %cst_14 = arith.constant 0.951229453 : f32
    %19 = vector.broadcast %cst_14 : f32 to vector<32x128xf32>
    %20 = arith.mulf %6, %19 : vector<32x128xf32>
    %21 = arith.addf %20, %12 : vector<32x128xf32>
    %cst_15 = arith.constant 0.000000e+00 : f32
    %22 = vector.broadcast %cst_15 : f32 to vector<32x128xf32>
    %23 = arith.cmpf ole, %8, %22 : vector<32x128xf32>
    %24 = arith.addf %18, %21 : vector<32x128xf32>
    %25 = arith.select %23, %24, %18 : vector<32x128xi1>, vector<32x128xf32>
    %cst_16 = arith.constant -5.200000e+01 : f32
    %26 = vector.broadcast %cst_16 : f32 to vector<32x128xf32>
    %27 = arith.cmpf oge, %25, %26 : vector<32x128xf32>
    %cst_17 = arith.constant 1.000000e-01 : f32
    %28 = vector.broadcast %cst_17 : f32 to vector<32x128xf32>
    %29 = arith.subf %8, %28 : vector<32x128xf32>
    %cst_18 = arith.constant 5.000000e+00 : f32
    %30 = vector.broadcast %cst_18 : f32 to vector<32x128xf32>
    %31 = arith.select %27, %30, %29 : vector<32x128xi1>, vector<32x128xf32>
    %cst_19 = arith.constant -6.500000e+01 : f32
    %32 = vector.broadcast %cst_19 : f32 to vector<32x128xf32>
    %33 = arith.select %27, %32, %25 : vector<32x128xi1>, vector<32x128xf32>
    %cst_20 = arith.constant 0.990049839 : f32
    %34 = vector.broadcast %cst_20 : f32 to vector<32x128xf32>
    %35 = arith.mulf %10, %34 : vector<32x128xf32>
    %cst_21 = arith.constant 1.000000e+00 : f32
    %36 = vector.broadcast %cst_21 : f32 to vector<32x128xf32>
    %37 = arith.select %27, %36, %35 : vector<32x128xi1>, vector<32x128xf32>
    %38 = arith.extui %27 : vector<32x128xi1> to vector<32x128xi32>
    %39 = arith.sitofp %38 : vector<32x128xi32> to vector<32x128xf32>
    %c0_22 = arith.constant 0 : index
    %c0_23 = arith.constant 0 : index
    %c0_24 = arith.constant 0 : index
    %40 = vector.load %arg4[%c0_22, %c0_23, %c0_24] : memref<16x32x128xf32, #tpu.memory_space<vmem>>, vector<1x32x128xf32>
    %41 = vector.shape_cast %40 : vector<1x32x128xf32> to vector<32x128xf32>
    %42 = vector.shape_cast %39 : vector<32x128xf32> to vector<1x32x128xf32>
    tpu.vector_store %arg4[%c0_22, %c0_23, %c0_24], %42 {strides = array<i32>} : memref<16x32x128xf32, #tpu.memory_space<vmem>>, vector<1x32x128xf32>,
    %c1_25 = arith.constant 1 : index
    %c0_26 = arith.constant 0 : index
    %c0_27 = arith.constant 0 : index
    %43 = vector.load %arg1[%c1_25, %c0_26, %c0_27] : memref<16x32x128xf32, #tpu.memory_space<vmem>>, vector<1x32x128xf32>
    %44 = vector.shape_cast %43 : vector<1x32x128xf32> to vector<32x128xf32>
    %cst_28 = arith.constant -6.500000e+01 : f32
    %45 = vector.broadcast %cst_28 : f32 to vector<32x128xf32>
    %46 = arith.subf %33, %45 : vector<32x128xf32>
    %cst_29 = arith.constant 0.999000489 : f32
    %47 = vector.broadcast %cst_29 : f32 to vector<32x128xf32>
    %48 = arith.mulf %47, %46 : vector<32x128xf32>
    %cst_30 = arith.constant -6.500000e+01 : f32
    %49 = vector.broadcast %cst_30 : f32 to vector<32x128xf32>
    %50 = arith.addf %48, %49 : vector<32x128xf32>
    %cst_31 = arith.constant 0.951229453 : f32
    %51 = vector.broadcast %cst_31 : f32 to vector<32x128xf32>
    %52 = arith.mulf %21, %51 : vector<32x128xf32>
    %53 = arith.addf %52, %44 : vector<32x128xf32>
    %cst_32 = arith.constant 0.000000e+00 : f32
    %54 = vector.broadcast %cst_32 : f32 to vector<32x128xf32>
    %55 = arith.cmpf ole, %31, %54 : vector<32x128xf32>
    %56 = arith.addf %50, %53 : vector<32x128xf32>
    %57 = arith.select %55, %56, %50 : vector<32x128xi1>, vector<32x128xf32>
    %cst_33 = arith.constant -5.200000e+01 : f32
    %58 = vector.broadcast %cst_33 : f32 to vector<32x128xf32>
    %59 = arith.cmpf oge, %57, %58 : vector<32x128xf32>
    %cst_34 = arith.constant 1.000000e-01 : f32
    %60 = vector.broadcast %cst_34 : f32 to vector<32x128xf32>
    %61 = arith.subf %31, %60 : vector<32x128xf32>
    %cst_35 = arith.constant 5.000000e+00 : f32
    %62 = vector.broadcast %cst_35 : f32 to vector<32x128xf32>
    %63 = arith.select %59, %62, %61 : vector<32x128xi1>, vector<32x128xf32>
    %cst_36 = arith.constant -6.500000e+01 : f32
    %64 = vector.broadcast %cst_36 : f32 to vector<32x128xf32>
    %65 = arith.select %59, %64, %57 : vector<32x128xi1>, vector<32x128xf32>
    %cst_37 = arith.constant 0.990049839 : f32
    %66 = vector.broadcast %cst_37 : f32 to vector<32x128xf32>
    %67 = arith.mulf %37, %66 : vector<32x128xf32>
    %cst_38 = arith.constant 1.000000e+00 : f32
    %68 = vector.broadcast %cst_38 : f32 to vector<32x128xf32>
    %69 = arith.select %59, %68, %67 : vector<32x128xi1>, vector<32x128xf32>
    %70 = arith.extui %59 : vector<32x128xi1> to vector<32x128xi32>
    %71 = arith.sitofp %70 : vector<32x128xi32> to vector<32x128xf32>
    %c1_39 = arith.constant 1 : index
    %c0_40 = arith.constant 0 : index
    %c0_41 = arith.constant 0 : index
    %72 = vector.load %arg4[%c1_39, %c0_40, %c0_41] : memref<16x32x128xf32, #tpu.memory_space<vmem>>, vector<1x32x128xf32>
    %73 = vector.shape_cast %72 : vector<1x32x128xf32> to vector<32x128xf32>
    %74 = vector.shape_cast %71 : vector<32x128xf32> to vector<1x32x128xf32>
    tpu.vector_store %arg4[%c1_39, %c0_40, %c0_41], %74 {strides = array<i32>} : memref<16x32x128xf32, #tpu.memory_space<vmem>>, vector<1x32x128xf32>,
    %c2_42 = arith.constant 2 : index
    %c0_43 = arith.constant 0 : index
    %c0_44 = arith.constant 0 : index
    %75 = vector.load %arg1[%c2_42, %c0_43, %c0_44] : memref<16x32x128xf32, #tpu.memory_space<vmem>>, vector<1x32x128xf32>
    %76 = vector.shape_cast %75 : vector<1x32x128xf32> to vector<32x128xf32>
    %cst_45 = arith.constant -6.500000e+01 : f32
    %77 = vector.broadcast %cst_45 : f32 to vector<32x128xf32>
    %78 = arith.subf %65, %77 : vector<32x128xf32>
    %cst_46 = arith.constant 0.999000489 : f32
    %79 = vector.broadcast %cst_46 : f32 to vector<32x128xf32>
    %80 = arith.mulf %79, %78 : vector<32x128xf32>
    %cst_47 = arith.constant -6.500000e+01 : f32
    %81 = vector.broadcast %cst_47 : f32 to vector<32x128xf32>
    %82 = arith.addf %80, %81 : vector<32x128xf32>
    %cst_48 = arith.constant 0.951229453 : f32
    %83 = vector.broadcast %cst_48 : f32 to vector<32x128xf32>
    %84 = arith.mulf %53, %83 : vector<32x128xf32>
    %85 = arith.addf %84, %76 : vector<32x128xf32>
    %cst_49 = arith.constant 0.000000e+00 : f32
    %86 = vector.broadcast %cst_49 : f32 to vector<32x128xf32>
    %87 = arith.cmpf ole, %63, %86 : vector<32x128xf32>
    %88 = arith.addf %82, %85 : vector<32x128xf32>
    %89 = arith.select %87, %88, %82 : vector<32x128xi1>, vector<32x128xf32>
    %cst_50 = arith.constant -5.200000e+01 : f32
    %90 = vector.broadcast %cst_50 : f32 to vector<32x128xf32>
    %91 = arith.cmpf oge, %89, %90 : vector<32x128xf32>
    %cst_51 = arith.constant 1.000000e-01 : f32
    %92 = vector.broadcast %cst_51 : f32 to vector<32x128xf32>
    %93 = arith.subf %63, %92 : vector<32x128xf32>
    %cst_52 = arith.constant 5.000000e+00 : f32
    %94 = vector.broadcast %cst_52 : f32 to vector<32x128xf32>
    %95 = arith.select %91, %94, %93 : vector<32x128xi1>, vector<32x128xf32>
    %cst_53 = arith.constant -6.500000e+01 : f32
    %96 = vector.broadcast %cst_53 : f32 to vector<32x128xf32>
    %97 = arith.select %91, %96, %89 : vector<32x128xi1>, vector<32x128xf32>
    %cst_54 = arith.constant 0.990049839 : f32
    %98 = vector.broadcast %cst_54 : f32 to vector<32x128xf32>
    %99 = arith.mulf %69, %98 : vector<32x128xf32>
    %cst_55 = arith.constant 1.000000e+00 : f32
    %100 = vector.broadcast %cst_55 : f32 to vector<32x128xf32>
    %101 = arith.select %91, %100, %99 : vector<32x128xi1>, vector<32x128xf32>
    %102 = arith.extui %91 : vector<32x128xi1> to vector<32x128xi32>
    %103 = arith.sitofp %102 : vector<32x128xi32> to vector<32x128xf32>
    %c2_56 = arith.constant 2 : index
    %c0_57 = arith.constant 0 : index
    %c0_58 = arith.constant 0 : index
    %104 = vector.load %arg4[%c2_56, %c0_57, %c0_58] : memref<16x32x128xf32, #tpu.memory_space<vmem>>, vector<1x32x128xf32>
    %105 = vector.shape_cast %104 : vector<1x32x128xf32> to vector<32x128xf32>
    %106 = vector.shape_cast %103 : vector<32x128xf32> to vector<1x32x128xf32>
    tpu.vector_store %arg4[%c2_56, %c0_57, %c0_58], %106 {strides = array<i32>} : memref<16x32x128xf32, #tpu.memory_space<vmem>>, vector<1x32x128xf32>,
    %c3_59 = arith.constant 3 : index
    %c0_60 = arith.constant 0 : index
    %c0_61 = arith.constant 0 : index
    %107 = vector.load %arg1[%c3_59, %c0_60, %c0_61] : memref<16x32x128xf32, #tpu.memory_space<vmem>>, vector<1x32x128xf32>
    %108 = vector.shape_cast %107 : vector<1x32x128xf32> to vector<32x128xf32>
    %cst_62 = arith.constant -6.500000e+01 : f32
    %109 = vector.broadcast %cst_62 : f32 to vector<32x128xf32>
    %110 = arith.subf %97, %109 : vector<32x128xf32>
    %cst_63 = arith.constant 0.999000489 : f32
    %111 = vector.broadcast %cst_63 : f32 to vector<32x128xf32>
    %112 = arith.mulf %111, %110 : vector<32x128xf32>
    %cst_64 = arith.constant -6.500000e+01 : f32
    %113 = vector.broadcast %cst_64 : f32 to vector<32x128xf32>
    %114 = arith.addf %112, %113 : vector<32x128xf32>
    %cst_65 = arith.constant 0.951229453 : f32
    %115 = vector.broadcast %cst_65 : f32 to vector<32x128xf32>
    %116 = arith.mulf %85, %115 : vector<32x128xf32>
    %117 = arith.addf %116, %108 : vector<32x128xf32>
    %cst_66 = arith.constant 0.000000e+00 : f32
    %118 = vector.broadcast %cst_66 : f32 to vector<32x128xf32>
    %119 = arith.cmpf ole, %95, %118 : vector<32x128xf32>
    %120 = arith.addf %114, %117 : vector<32x128xf32>
    %121 = arith.select %119, %120, %114 : vector<32x128xi1>, vector<32x128xf32>
    %cst_67 = arith.constant -5.200000e+01 : f32
    %122 = vector.broadcast %cst_67 : f32 to vector<32x128xf32>
    %123 = arith.cmpf oge, %121, %122 : vector<32x128xf32>
    %cst_68 = arith.constant 1.000000e-01 : f32
    %124 = vector.broadcast %cst_68 : f32 to vector<32x128xf32>
    %125 = arith.subf %95, %124 : vector<32x128xf32>
    %cst_69 = arith.constant 5.000000e+00 : f32
    %126 = vector.broadcast %cst_69 : f32 to vector<32x128xf32>
    %127 = arith.select %123, %126, %125 : vector<32x128xi1>, vector<32x128xf32>
    %cst_70 = arith.constant -6.500000e+01 : f32
    %128 = vector.broadcast %cst_70 : f32 to vector<32x128xf32>
    %129 = arith.select %123, %128, %121 : vector<32x128xi1>, vector<32x128xf32>
    %cst_71 = arith.constant 0.990049839 : f32
    %130 = vector.broadcast %cst_71 : f32 to vector<32x128xf32>
    %131 = arith.mulf %101, %130 : vector<32x128xf32>
    %cst_72 = arith.constant 1.000000e+00 : f32
    %132 = vector.broadcast %cst_72 : f32 to vector<32x128xf32>
    %133 = arith.select %123, %132, %131 : vector<32x128xi1>, vector<32x128xf32>
    %134 = arith.extui %123 : vector<32x128xi1> to vector<32x128xi32>
    %135 = arith.sitofp %134 : vector<32x128xi32> to vector<32x128xf32>
    %c3_73 = arith.constant 3 : index
    %c0_74 = arith.constant 0 : index
    %c0_75 = arith.constant 0 : index
    %136 = vector.load %arg4[%c3_73, %c0_74, %c0_75] : memref<16x32x128xf32, #tpu.memory_space<vmem>>, vector<1x32x128xf32>
    %137 = vector.shape_cast %136 : vector<1x32x128xf32> to vector<32x128xf32>
    %138 = vector.shape_cast %135 : vector<32x128xf32> to vector<1x32x128xf32>
    tpu.vector_store %arg4[%c3_73, %c0_74, %c0_75], %138 {strides = array<i32>} : memref<16x32x128xf32, #tpu.memory_space<vmem>>, vector<1x32x128xf32>,
    %c4 = arith.constant 4 : index
    %c0_76 = arith.constant 0 : index
    %c0_77 = arith.constant 0 : index
    %139 = vector.load %arg1[%c4, %c0_76, %c0_77] : memref<16x32x128xf32, #tpu.memory_space<vmem>>, vector<1x32x128xf32>
    %140 = vector.shape_cast %139 : vector<1x32x128xf32> to vector<32x128xf32>
    %cst_78 = arith.constant -6.500000e+01 : f32
    %141 = vector.broadcast %cst_78 : f32 to vector<32x128xf32>
    %142 = arith.subf %129, %141 : vector<32x128xf32>
    %cst_79 = arith.constant 0.999000489 : f32
    %143 = vector.broadcast %cst_79 : f32 to vector<32x128xf32>
    %144 = arith.mulf %143, %142 : vector<32x128xf32>
    %cst_80 = arith.constant -6.500000e+01 : f32
    %145 = vector.broadcast %cst_80 : f32 to vector<32x128xf32>
    %146 = arith.addf %144, %145 : vector<32x128xf32>
    %cst_81 = arith.constant 0.951229453 : f32
    %147 = vector.broadcast %cst_81 : f32 to vector<32x128xf32>
    %148 = arith.mulf %117, %147 : vector<32x128xf32>
    %149 = arith.addf %148, %140 : vector<32x128xf32>
    %cst_82 = arith.constant 0.000000e+00 : f32
    %150 = vector.broadcast %cst_82 : f32 to vector<32x128xf32>
    %151 = arith.cmpf ole, %127, %150 : vector<32x128xf32>
    %152 = arith.addf %146, %149 : vector<32x128xf32>
    %153 = arith.select %151, %152, %146 : vector<32x128xi1>, vector<32x128xf32>
    %cst_83 = arith.constant -5.200000e+01 : f32
    %154 = vector.broadcast %cst_83 : f32 to vector<32x128xf32>
    %155 = arith.cmpf oge, %153, %154 : vector<32x128xf32>
    %cst_84 = arith.constant 1.000000e-01 : f32
    %156 = vector.broadcast %cst_84 : f32 to vector<32x128xf32>
    %157 = arith.subf %127, %156 : vector<32x128xf32>
    %cst_85 = arith.constant 5.000000e+00 : f32
    %158 = vector.broadcast %cst_85 : f32 to vector<32x128xf32>
    %159 = arith.select %155, %158, %157 : vector<32x128xi1>, vector<32x128xf32>
    %cst_86 = arith.constant -6.500000e+01 : f32
    %160 = vector.broadcast %cst_86 : f32 to vector<32x128xf32>
    %161 = arith.select %155, %160, %153 : vector<32x128xi1>, vector<32x128xf32>
    %cst_87 = arith.constant 0.990049839 : f32
    %162 = vector.broadcast %cst_87 : f32 to vector<32x128xf32>
    %163 = arith.mulf %133, %162 : vector<32x128xf32>
    %cst_88 = arith.constant 1.000000e+00 : f32
    %164 = vector.broadcast %cst_88 : f32 to vector<32x128xf32>
    %165 = arith.select %155, %164, %163 : vector<32x128xi1>, vector<32x128xf32>
    %166 = arith.extui %155 : vector<32x128xi1> to vector<32x128xi32>
    %167 = arith.sitofp %166 : vector<32x128xi32> to vector<32x128xf32>
    %c4_89 = arith.constant 4 : index
    %c0_90 = arith.constant 0 : index
    %c0_91 = arith.constant 0 : index
    %168 = vector.load %arg4[%c4_89, %c0_90, %c0_91] : memref<16x32x128xf32, #tpu.memory_space<vmem>>, vector<1x32x128xf32>
    %169 = vector.shape_cast %168 : vector<1x32x128xf32> to vector<32x128xf32>
    %170 = vector.shape_cast %167 : vector<32x128xf32> to vector<1x32x128xf32>
    tpu.vector_store %arg4[%c4_89, %c0_90, %c0_91], %170 {strides = array<i32>} : memref<16x32x128xf32, #tpu.memory_space<vmem>>, vector<1x32x128xf32>,
    %c5 = arith.constant 5 : index
    %c0_92 = arith.constant 0 : index
    %c0_93 = arith.constant 0 : index
    %171 = vector.load %arg1[%c5, %c0_92, %c0_93] : memref<16x32x128xf32, #tpu.memory_space<vmem>>, vector<1x32x128xf32>
    %172 = vector.shape_cast %171 : vector<1x32x128xf32> to vector<32x128xf32>
    %cst_94 = arith.constant -6.500000e+01 : f32
    %173 = vector.broadcast %cst_94 : f32 to vector<32x128xf32>
    %174 = arith.subf %161, %173 : vector<32x128xf32>
    %cst_95 = arith.constant 0.999000489 : f32
    %175 = vector.broadcast %cst_95 : f32 to vector<32x128xf32>
    %176 = arith.mulf %175, %174 : vector<32x128xf32>
    %cst_96 = arith.constant -6.500000e+01 : f32
    %177 = vector.broadcast %cst_96 : f32 to vector<32x128xf32>
    %178 = arith.addf %176, %177 : vector<32x128xf32>
    %cst_97 = arith.constant 0.951229453 : f32
    %179 = vector.broadcast %cst_97 : f32 to vector<32x128xf32>
    %180 = arith.mulf %149, %179 : vector<32x128xf32>
    %181 = arith.addf %180, %172 : vector<32x128xf32>
    %cst_98 = arith.constant 0.000000e+00 : f32
    %182 = vector.broadcast %cst_98 : f32 to vector<32x128xf32>
    %183 = arith.cmpf ole, %159, %182 : vector<32x128xf32>
    %184 = arith.addf %178, %181 : vector<32x128xf32>
    %185 = arith.select %183, %184, %178 : vector<32x128xi1>, vector<32x128xf32>
    %cst_99 = arith.constant -5.200000e+01 : f32
    %186 = vector.broadcast %cst_99 : f32 to vector<32x128xf32>
    %187 = arith.cmpf oge, %185, %186 : vector<32x128xf32>
    %cst_100 = arith.constant 1.000000e-01 : f32
    %188 = vector.broadcast %cst_100 : f32 to vector<32x128xf32>
    %189 = arith.subf %159, %188 : vector<32x128xf32>
    %cst_101 = arith.constant 5.000000e+00 : f32
    %190 = vector.broadcast %cst_101 : f32 to vector<32x128xf32>
    %191 = arith.select %187, %190, %189 : vector<32x128xi1>, vector<32x128xf32>
    %cst_102 = arith.constant -6.500000e+01 : f32
    %192 = vector.broadcast %cst_102 : f32 to vector<32x128xf32>
    %193 = arith.select %187, %192, %185 : vector<32x128xi1>, vector<32x128xf32>
    %cst_103 = arith.constant 0.990049839 : f32
    %194 = vector.broadcast %cst_103 : f32 to vector<32x128xf32>
    %195 = arith.mulf %165, %194 : vector<32x128xf32>
    %cst_104 = arith.constant 1.000000e+00 : f32
    %196 = vector.broadcast %cst_104 : f32 to vector<32x128xf32>
    %197 = arith.select %187, %196, %195 : vector<32x128xi1>, vector<32x128xf32>
    %198 = arith.extui %187 : vector<32x128xi1> to vector<32x128xi32>
    %199 = arith.sitofp %198 : vector<32x128xi32> to vector<32x128xf32>
    %c5_105 = arith.constant 5 : index
    %c0_106 = arith.constant 0 : index
    %c0_107 = arith.constant 0 : index
    %200 = vector.load %arg4[%c5_105, %c0_106, %c0_107] : memref<16x32x128xf32, #tpu.memory_space<vmem>>, vector<1x32x128xf32>
    %201 = vector.shape_cast %200 : vector<1x32x128xf32> to vector<32x128xf32>
    %202 = vector.shape_cast %199 : vector<32x128xf32> to vector<1x32x128xf32>
    tpu.vector_store %arg4[%c5_105, %c0_106, %c0_107], %202 {strides = array<i32>} : memref<16x32x128xf32, #tpu.memory_space<vmem>>, vector<1x32x128xf32>,
    %c6 = arith.constant 6 : index
    %c0_108 = arith.constant 0 : index
    %c0_109 = arith.constant 0 : index
    %203 = vector.load %arg1[%c6, %c0_108, %c0_109] : memref<16x32x128xf32, #tpu.memory_space<vmem>>, vector<1x32x128xf32>
    %204 = vector.shape_cast %203 : vector<1x32x128xf32> to vector<32x128xf32>
    %cst_110 = arith.constant -6.500000e+01 : f32
    %205 = vector.broadcast %cst_110 : f32 to vector<32x128xf32>
    %206 = arith.subf %193, %205 : vector<32x128xf32>
    %cst_111 = arith.constant 0.999000489 : f32
    %207 = vector.broadcast %cst_111 : f32 to vector<32x128xf32>
    %208 = arith.mulf %207, %206 : vector<32x128xf32>
    %cst_112 = arith.constant -6.500000e+01 : f32
    %209 = vector.broadcast %cst_112 : f32 to vector<32x128xf32>
    %210 = arith.addf %208, %209 : vector<32x128xf32>
    %cst_113 = arith.constant 0.951229453 : f32
    %211 = vector.broadcast %cst_113 : f32 to vector<32x128xf32>
    %212 = arith.mulf %181, %211 : vector<32x128xf32>
    %213 = arith.addf %212, %204 : vector<32x128xf32>
    %cst_114 = arith.constant 0.000000e+00 : f32
    %214 = vector.broadcast %cst_114 : f32 to vector<32x128xf32>
    %215 = arith.cmpf ole, %191, %214 : vector<32x128xf32>
    %216 = arith.addf %210, %213 : vector<32x128xf32>
    %217 = arith.select %215, %216, %210 : vector<32x128xi1>, vector<32x128xf32>
    %cst_115 = arith.constant -5.200000e+01 : f32
    %218 = vector.broadcast %cst_115 : f32 to vector<32x128xf32>
    %219 = arith.cmpf oge, %217, %218 : vector<32x128xf32>
    %cst_116 = arith.constant 1.000000e-01 : f32
    %220 = vector.broadcast %cst_116 : f32 to vector<32x128xf32>
    %221 = arith.subf %191, %220 : vector<32x128xf32>
    %cst_117 = arith.constant 5.000000e+00 : f32
    %222 = vector.broadcast %cst_117 : f32 to vector<32x128xf32>
    %223 = arith.select %219, %222, %221 : vector<32x128xi1>, vector<32x128xf32>
    %cst_118 = arith.constant -6.500000e+01 : f32
    %224 = vector.broadcast %cst_118 : f32 to vector<32x128xf32>
    %225 = arith.select %219, %224, %217 : vector<32x128xi1>, vector<32x128xf32>
    %cst_119 = arith.constant 0.990049839 : f32
    %226 = vector.broadcast %cst_119 : f32 to vector<32x128xf32>
    %227 = arith.mulf %197, %226 : vector<32x128xf32>
    %cst_120 = arith.constant 1.000000e+00 : f32
    %228 = vector.broadcast %cst_120 : f32 to vector<32x128xf32>
    %229 = arith.select %219, %228, %227 : vector<32x128xi1>, vector<32x128xf32>
    %230 = arith.extui %219 : vector<32x128xi1> to vector<32x128xi32>
    %231 = arith.sitofp %230 : vector<32x128xi32> to vector<32x128xf32>
    %c6_121 = arith.constant 6 : index
    %c0_122 = arith.constant 0 : index
    %c0_123 = arith.constant 0 : index
    %232 = vector.load %arg4[%c6_121, %c0_122, %c0_123] : memref<16x32x128xf32, #tpu.memory_space<vmem>>, vector<1x32x128xf32>
    %233 = vector.shape_cast %232 : vector<1x32x128xf32> to vector<32x128xf32>
    %234 = vector.shape_cast %231 : vector<32x128xf32> to vector<1x32x128xf32>
    tpu.vector_store %arg4[%c6_121, %c0_122, %c0_123], %234 {strides = array<i32>} : memref<16x32x128xf32, #tpu.memory_space<vmem>>, vector<1x32x128xf32>,
    %c7 = arith.constant 7 : index
    %c0_124 = arith.constant 0 : index
    %c0_125 = arith.constant 0 : index
    %235 = vector.load %arg1[%c7, %c0_124, %c0_125] : memref<16x32x128xf32, #tpu.memory_space<vmem>>, vector<1x32x128xf32>
    %236 = vector.shape_cast %235 : vector<1x32x128xf32> to vector<32x128xf32>
    %cst_126 = arith.constant -6.500000e+01 : f32
    %237 = vector.broadcast %cst_126 : f32 to vector<32x128xf32>
    %238 = arith.subf %225, %237 : vector<32x128xf32>
    %cst_127 = arith.constant 0.999000489 : f32
    %239 = vector.broadcast %cst_127 : f32 to vector<32x128xf32>
    %240 = arith.mulf %239, %238 : vector<32x128xf32>
    %cst_128 = arith.constant -6.500000e+01 : f32
    %241 = vector.broadcast %cst_128 : f32 to vector<32x128xf32>
    %242 = arith.addf %240, %241 : vector<32x128xf32>
    %cst_129 = arith.constant 0.951229453 : f32
    %243 = vector.broadcast %cst_129 : f32 to vector<32x128xf32>
    %244 = arith.mulf %213, %243 : vector<32x128xf32>
    %245 = arith.addf %244, %236 : vector<32x128xf32>
    %cst_130 = arith.constant 0.000000e+00 : f32
    %246 = vector.broadcast %cst_130 : f32 to vector<32x128xf32>
    %247 = arith.cmpf ole, %223, %246 : vector<32x128xf32>
    %248 = arith.addf %242, %245 : vector<32x128xf32>
    %249 = arith.select %247, %248, %242 : vector<32x128xi1>, vector<32x128xf32>
    %cst_131 = arith.constant -5.200000e+01 : f32
    %250 = vector.broadcast %cst_131 : f32 to vector<32x128xf32>
    %251 = arith.cmpf oge, %249, %250 : vector<32x128xf32>
    %cst_132 = arith.constant 1.000000e-01 : f32
    %252 = vector.broadcast %cst_132 : f32 to vector<32x128xf32>
    %253 = arith.subf %223, %252 : vector<32x128xf32>
    %cst_133 = arith.constant 5.000000e+00 : f32
    %254 = vector.broadcast %cst_133 : f32 to vector<32x128xf32>
    %255 = arith.select %251, %254, %253 : vector<32x128xi1>, vector<32x128xf32>
    %cst_134 = arith.constant -6.500000e+01 : f32
    %256 = vector.broadcast %cst_134 : f32 to vector<32x128xf32>
    %257 = arith.select %251, %256, %249 : vector<32x128xi1>, vector<32x128xf32>
    %cst_135 = arith.constant 0.990049839 : f32
    %258 = vector.broadcast %cst_135 : f32 to vector<32x128xf32>
    %259 = arith.mulf %229, %258 : vector<32x128xf32>
    %cst_136 = arith.constant 1.000000e+00 : f32
    %260 = vector.broadcast %cst_136 : f32 to vector<32x128xf32>
    %261 = arith.select %251, %260, %259 : vector<32x128xi1>, vector<32x128xf32>
    %262 = arith.extui %251 : vector<32x128xi1> to vector<32x128xi32>
    %263 = arith.sitofp %262 : vector<32x128xi32> to vector<32x128xf32>
    %c7_137 = arith.constant 7 : index
    %c0_138 = arith.constant 0 : index
    %c0_139 = arith.constant 0 : index
    %264 = vector.load %arg4[%c7_137, %c0_138, %c0_139] : memref<16x32x128xf32, #tpu.memory_space<vmem>>, vector<1x32x128xf32>
    %265 = vector.shape_cast %264 : vector<1x32x128xf32> to vector<32x128xf32>
    %266 = vector.shape_cast %263 : vector<32x128xf32> to vector<1x32x128xf32>
    tpu.vector_store %arg4[%c7_137, %c0_138, %c0_139], %266 {strides = array<i32>} : memref<16x32x128xf32, #tpu.memory_space<vmem>>, vector<1x32x128xf32>,
    %c8 = arith.constant 8 : index
    %c0_140 = arith.constant 0 : index
    %c0_141 = arith.constant 0 : index
    %267 = vector.load %arg1[%c8, %c0_140, %c0_141] : memref<16x32x128xf32, #tpu.memory_space<vmem>>, vector<1x32x128xf32>
    %268 = vector.shape_cast %267 : vector<1x32x128xf32> to vector<32x128xf32>
    %cst_142 = arith.constant -6.500000e+01 : f32
    %269 = vector.broadcast %cst_142 : f32 to vector<32x128xf32>
    %270 = arith.subf %257, %269 : vector<32x128xf32>
    %cst_143 = arith.constant 0.999000489 : f32
    %271 = vector.broadcast %cst_143 : f32 to vector<32x128xf32>
    %272 = arith.mulf %271, %270 : vector<32x128xf32>
    %cst_144 = arith.constant -6.500000e+01 : f32
    %273 = vector.broadcast %cst_144 : f32 to vector<32x128xf32>
    %274 = arith.addf %272, %273 : vector<32x128xf32>
    %cst_145 = arith.constant 0.951229453 : f32
    %275 = vector.broadcast %cst_145 : f32 to vector<32x128xf32>
    %276 = arith.mulf %245, %275 : vector<32x128xf32>
    %277 = arith.addf %276, %268 : vector<32x128xf32>
    %cst_146 = arith.constant 0.000000e+00 : f32
    %278 = vector.broadcast %cst_146 : f32 to vector<32x128xf32>
    %279 = arith.cmpf ole, %255, %278 : vector<32x128xf32>
    %280 = arith.addf %274, %277 : vector<32x128xf32>
    %281 = arith.select %279, %280, %274 : vector<32x128xi1>, vector<32x128xf32>
    %cst_147 = arith.constant -5.200000e+01 : f32
    %282 = vector.broadcast %cst_147 : f32 to vector<32x128xf32>
    %283 = arith.cmpf oge, %281, %282 : vector<32x128xf32>
    %cst_148 = arith.constant 1.000000e-01 : f32
    %284 = vector.broadcast %cst_148 : f32 to vector<32x128xf32>
    %285 = arith.subf %255, %284 : vector<32x128xf32>
    %cst_149 = arith.constant 5.000000e+00 : f32
    %286 = vector.broadcast %cst_149 : f32 to vector<32x128xf32>
    %287 = arith.select %283, %286, %285 : vector<32x128xi1>, vector<32x128xf32>
    %cst_150 = arith.constant -6.500000e+01 : f32
    %288 = vector.broadcast %cst_150 : f32 to vector<32x128xf32>
    %289 = arith.select %283, %288, %281 : vector<32x128xi1>, vector<32x128xf32>
    %cst_151 = arith.constant 0.990049839 : f32
    %290 = vector.broadcast %cst_151 : f32 to vector<32x128xf32>
    %291 = arith.mulf %261, %290 : vector<32x128xf32>
    %cst_152 = arith.constant 1.000000e+00 : f32
    %292 = vector.broadcast %cst_152 : f32 to vector<32x128xf32>
    %293 = arith.select %283, %292, %291 : vector<32x128xi1>, vector<32x128xf32>
    %294 = arith.extui %283 : vector<32x128xi1> to vector<32x128xi32>
    %295 = arith.sitofp %294 : vector<32x128xi32> to vector<32x128xf32>
    %c8_153 = arith.constant 8 : index
    %c0_154 = arith.constant 0 : index
    %c0_155 = arith.constant 0 : index
    %296 = vector.load %arg4[%c8_153, %c0_154, %c0_155] : memref<16x32x128xf32, #tpu.memory_space<vmem>>, vector<1x32x128xf32>
    %297 = vector.shape_cast %296 : vector<1x32x128xf32> to vector<32x128xf32>
    %298 = vector.shape_cast %295 : vector<32x128xf32> to vector<1x32x128xf32>
    tpu.vector_store %arg4[%c8_153, %c0_154, %c0_155], %298 {strides = array<i32>} : memref<16x32x128xf32, #tpu.memory_space<vmem>>, vector<1x32x128xf32>,
    %c9 = arith.constant 9 : index
    %c0_156 = arith.constant 0 : index
    %c0_157 = arith.constant 0 : index
    %299 = vector.load %arg1[%c9, %c0_156, %c0_157] : memref<16x32x128xf32, #tpu.memory_space<vmem>>, vector<1x32x128xf32>
    %300 = vector.shape_cast %299 : vector<1x32x128xf32> to vector<32x128xf32>
    %cst_158 = arith.constant -6.500000e+01 : f32
    %301 = vector.broadcast %cst_158 : f32 to vector<32x128xf32>
    %302 = arith.subf %289, %301 : vector<32x128xf32>
    %cst_159 = arith.constant 0.999000489 : f32
    %303 = vector.broadcast %cst_159 : f32 to vector<32x128xf32>
    %304 = arith.mulf %303, %302 : vector<32x128xf32>
    %cst_160 = arith.constant -6.500000e+01 : f32
    %305 = vector.broadcast %cst_160 : f32 to vector<32x128xf32>
    %306 = arith.addf %304, %305 : vector<32x128xf32>
    %cst_161 = arith.constant 0.951229453 : f32
    %307 = vector.broadcast %cst_161 : f32 to vector<32x128xf32>
    %308 = arith.mulf %277, %307 : vector<32x128xf32>
    %309 = arith.addf %308, %300 : vector<32x128xf32>
    %cst_162 = arith.constant 0.000000e+00 : f32
    %310 = vector.broadcast %cst_162 : f32 to vector<32x128xf32>
    %311 = arith.cmpf ole, %287, %310 : vector<32x128xf32>
    %312 = arith.addf %306, %309 : vector<32x128xf32>
    %313 = arith.select %311, %312, %306 : vector<32x128xi1>, vector<32x128xf32>
    %cst_163 = arith.constant -5.200000e+01 : f32
    %314 = vector.broadcast %cst_163 : f32 to vector<32x128xf32>
    %315 = arith.cmpf oge, %313, %314 : vector<32x128xf32>
    %cst_164 = arith.constant 1.000000e-01 : f32
    %316 = vector.broadcast %cst_164 : f32 to vector<32x128xf32>
    %317 = arith.subf %287, %316 : vector<32x128xf32>
    %cst_165 = arith.constant 5.000000e+00 : f32
    %318 = vector.broadcast %cst_165 : f32 to vector<32x128xf32>
    %319 = arith.select %315, %318, %317 : vector<32x128xi1>, vector<32x128xf32>
    %cst_166 = arith.constant -6.500000e+01 : f32
    %320 = vector.broadcast %cst_166 : f32 to vector<32x128xf32>
    %321 = arith.select %315, %320, %313 : vector<32x128xi1>, vector<32x128xf32>
    %cst_167 = arith.constant 0.990049839 : f32
    %322 = vector.broadcast %cst_167 : f32 to vector<32x128xf32>
    %323 = arith.mulf %293, %322 : vector<32x128xf32>
    %cst_168 = arith.constant 1.000000e+00 : f32
    %324 = vector.broadcast %cst_168 : f32 to vector<32x128xf32>
    %325 = arith.select %315, %324, %323 : vector<32x128xi1>, vector<32x128xf32>
    %326 = arith.extui %315 : vector<32x128xi1> to vector<32x128xi32>
    %327 = arith.sitofp %326 : vector<32x128xi32> to vector<32x128xf32>
    %c9_169 = arith.constant 9 : index
    %c0_170 = arith.constant 0 : index
    %c0_171 = arith.constant 0 : index
    %328 = vector.load %arg4[%c9_169, %c0_170, %c0_171] : memref<16x32x128xf32, #tpu.memory_space<vmem>>, vector<1x32x128xf32>
    %329 = vector.shape_cast %328 : vector<1x32x128xf32> to vector<32x128xf32>
    %330 = vector.shape_cast %327 : vector<32x128xf32> to vector<1x32x128xf32>
    tpu.vector_store %arg4[%c9_169, %c0_170, %c0_171], %330 {strides = array<i32>} : memref<16x32x128xf32, #tpu.memory_space<vmem>>, vector<1x32x128xf32>,
    %c10 = arith.constant 10 : index
    %c0_172 = arith.constant 0 : index
    %c0_173 = arith.constant 0 : index
    %331 = vector.load %arg1[%c10, %c0_172, %c0_173] : memref<16x32x128xf32, #tpu.memory_space<vmem>>, vector<1x32x128xf32>
    %332 = vector.shape_cast %331 : vector<1x32x128xf32> to vector<32x128xf32>
    %cst_174 = arith.constant -6.500000e+01 : f32
    %333 = vector.broadcast %cst_174 : f32 to vector<32x128xf32>
    %334 = arith.subf %321, %333 : vector<32x128xf32>
    %cst_175 = arith.constant 0.999000489 : f32
    %335 = vector.broadcast %cst_175 : f32 to vector<32x128xf32>
    %336 = arith.mulf %335, %334 : vector<32x128xf32>
    %cst_176 = arith.constant -6.500000e+01 : f32
    %337 = vector.broadcast %cst_176 : f32 to vector<32x128xf32>
    %338 = arith.addf %336, %337 : vector<32x128xf32>
    %cst_177 = arith.constant 0.951229453 : f32
    %339 = vector.broadcast %cst_177 : f32 to vector<32x128xf32>
    %340 = arith.mulf %309, %339 : vector<32x128xf32>
    %341 = arith.addf %340, %332 : vector<32x128xf32>
    %cst_178 = arith.constant 0.000000e+00 : f32
    %342 = vector.broadcast %cst_178 : f32 to vector<32x128xf32>
    %343 = arith.cmpf ole, %319, %342 : vector<32x128xf32>
    %344 = arith.addf %338, %341 : vector<32x128xf32>
    %345 = arith.select %343, %344, %338 : vector<32x128xi1>, vector<32x128xf32>
    %cst_179 = arith.constant -5.200000e+01 : f32
    %346 = vector.broadcast %cst_179 : f32 to vector<32x128xf32>
    %347 = arith.cmpf oge, %345, %346 : vector<32x128xf32>
    %cst_180 = arith.constant 1.000000e-01 : f32
    %348 = vector.broadcast %cst_180 : f32 to vector<32x128xf32>
    %349 = arith.subf %319, %348 : vector<32x128xf32>
    %cst_181 = arith.constant 5.000000e+00 : f32
    %350 = vector.broadcast %cst_181 : f32 to vector<32x128xf32>
    %351 = arith.select %347, %350, %349 : vector<32x128xi1>, vector<32x128xf32>
    %cst_182 = arith.constant -6.500000e+01 : f32
    %352 = vector.broadcast %cst_182 : f32 to vector<32x128xf32>
    %353 = arith.select %347, %352, %345 : vector<32x128xi1>, vector<32x128xf32>
    %cst_183 = arith.constant 0.990049839 : f32
    %354 = vector.broadcast %cst_183 : f32 to vector<32x128xf32>
    %355 = arith.mulf %325, %354 : vector<32x128xf32>
    %cst_184 = arith.constant 1.000000e+00 : f32
    %356 = vector.broadcast %cst_184 : f32 to vector<32x128xf32>
    %357 = arith.select %347, %356, %355 : vector<32x128xi1>, vector<32x128xf32>
    %358 = arith.extui %347 : vector<32x128xi1> to vector<32x128xi32>
    %359 = arith.sitofp %358 : vector<32x128xi32> to vector<32x128xf32>
    %c10_185 = arith.constant 10 : index
    %c0_186 = arith.constant 0 : index
    %c0_187 = arith.constant 0 : index
    %360 = vector.load %arg4[%c10_185, %c0_186, %c0_187] : memref<16x32x128xf32, #tpu.memory_space<vmem>>, vector<1x32x128xf32>
    %361 = vector.shape_cast %360 : vector<1x32x128xf32> to vector<32x128xf32>
    %362 = vector.shape_cast %359 : vector<32x128xf32> to vector<1x32x128xf32>
    tpu.vector_store %arg4[%c10_185, %c0_186, %c0_187], %362 {strides = array<i32>} : memref<16x32x128xf32, #tpu.memory_space<vmem>>, vector<1x32x128xf32>,
    %c11 = arith.constant 11 : index
    %c0_188 = arith.constant 0 : index
    %c0_189 = arith.constant 0 : index
    %363 = vector.load %arg1[%c11, %c0_188, %c0_189] : memref<16x32x128xf32, #tpu.memory_space<vmem>>, vector<1x32x128xf32>
    %364 = vector.shape_cast %363 : vector<1x32x128xf32> to vector<32x128xf32>
    %cst_190 = arith.constant -6.500000e+01 : f32
    %365 = vector.broadcast %cst_190 : f32 to vector<32x128xf32>
    %366 = arith.subf %353, %365 : vector<32x128xf32>
    %cst_191 = arith.constant 0.999000489 : f32
    %367 = vector.broadcast %cst_191 : f32 to vector<32x128xf32>
    %368 = arith.mulf %367, %366 : vector<32x128xf32>
    %cst_192 = arith.constant -6.500000e+01 : f32
    %369 = vector.broadcast %cst_192 : f32 to vector<32x128xf32>
    %370 = arith.addf %368, %369 : vector<32x128xf32>
    %cst_193 = arith.constant 0.951229453 : f32
    %371 = vector.broadcast %cst_193 : f32 to vector<32x128xf32>
    %372 = arith.mulf %341, %371 : vector<32x128xf32>
    %373 = arith.addf %372, %364 : vector<32x128xf32>
    %cst_194 = arith.constant 0.000000e+00 : f32
    %374 = vector.broadcast %cst_194 : f32 to vector<32x128xf32>
    %375 = arith.cmpf ole, %351, %374 : vector<32x128xf32>
    %376 = arith.addf %370, %373 : vector<32x128xf32>
    %377 = arith.select %375, %376, %370 : vector<32x128xi1>, vector<32x128xf32>
    %cst_195 = arith.constant -5.200000e+01 : f32
    %378 = vector.broadcast %cst_195 : f32 to vector<32x128xf32>
    %379 = arith.cmpf oge, %377, %378 : vector<32x128xf32>
    %cst_196 = arith.constant 1.000000e-01 : f32
    %380 = vector.broadcast %cst_196 : f32 to vector<32x128xf32>
    %381 = arith.subf %351, %380 : vector<32x128xf32>
    %cst_197 = arith.constant 5.000000e+00 : f32
    %382 = vector.broadcast %cst_197 : f32 to vector<32x128xf32>
    %383 = arith.select %379, %382, %381 : vector<32x128xi1>, vector<32x128xf32>
    %cst_198 = arith.constant -6.500000e+01 : f32
    %384 = vector.broadcast %cst_198 : f32 to vector<32x128xf32>
    %385 = arith.select %379, %384, %377 : vector<32x128xi1>, vector<32x128xf32>
    %cst_199 = arith.constant 0.990049839 : f32
    %386 = vector.broadcast %cst_199 : f32 to vector<32x128xf32>
    %387 = arith.mulf %357, %386 : vector<32x128xf32>
    %cst_200 = arith.constant 1.000000e+00 : f32
    %388 = vector.broadcast %cst_200 : f32 to vector<32x128xf32>
    %389 = arith.select %379, %388, %387 : vector<32x128xi1>, vector<32x128xf32>
    %390 = arith.extui %379 : vector<32x128xi1> to vector<32x128xi32>
    %391 = arith.sitofp %390 : vector<32x128xi32> to vector<32x128xf32>
    %c11_201 = arith.constant 11 : index
    %c0_202 = arith.constant 0 : index
    %c0_203 = arith.constant 0 : index
    %392 = vector.load %arg4[%c11_201, %c0_202, %c0_203] : memref<16x32x128xf32, #tpu.memory_space<vmem>>, vector<1x32x128xf32>
    %393 = vector.shape_cast %392 : vector<1x32x128xf32> to vector<32x128xf32>
    %394 = vector.shape_cast %391 : vector<32x128xf32> to vector<1x32x128xf32>
    tpu.vector_store %arg4[%c11_201, %c0_202, %c0_203], %394 {strides = array<i32>} : memref<16x32x128xf32, #tpu.memory_space<vmem>>, vector<1x32x128xf32>,
    %c12 = arith.constant 12 : index
    %c0_204 = arith.constant 0 : index
    %c0_205 = arith.constant 0 : index
    %395 = vector.load %arg1[%c12, %c0_204, %c0_205] : memref<16x32x128xf32, #tpu.memory_space<vmem>>, vector<1x32x128xf32>
    %396 = vector.shape_cast %395 : vector<1x32x128xf32> to vector<32x128xf32>
    %cst_206 = arith.constant -6.500000e+01 : f32
    %397 = vector.broadcast %cst_206 : f32 to vector<32x128xf32>
    %398 = arith.subf %385, %397 : vector<32x128xf32>
    %cst_207 = arith.constant 0.999000489 : f32
    %399 = vector.broadcast %cst_207 : f32 to vector<32x128xf32>
    %400 = arith.mulf %399, %398 : vector<32x128xf32>
    %cst_208 = arith.constant -6.500000e+01 : f32
    %401 = vector.broadcast %cst_208 : f32 to vector<32x128xf32>
    %402 = arith.addf %400, %401 : vector<32x128xf32>
    %cst_209 = arith.constant 0.951229453 : f32
    %403 = vector.broadcast %cst_209 : f32 to vector<32x128xf32>
    %404 = arith.mulf %373, %403 : vector<32x128xf32>
    %405 = arith.addf %404, %396 : vector<32x128xf32>
    %cst_210 = arith.constant 0.000000e+00 : f32
    %406 = vector.broadcast %cst_210 : f32 to vector<32x128xf32>
    %407 = arith.cmpf ole, %383, %406 : vector<32x128xf32>
    %408 = arith.addf %402, %405 : vector<32x128xf32>
    %409 = arith.select %407, %408, %402 : vector<32x128xi1>, vector<32x128xf32>
    %cst_211 = arith.constant -5.200000e+01 : f32
    %410 = vector.broadcast %cst_211 : f32 to vector<32x128xf32>
    %411 = arith.cmpf oge, %409, %410 : vector<32x128xf32>
    %cst_212 = arith.constant 1.000000e-01 : f32
    %412 = vector.broadcast %cst_212 : f32 to vector<32x128xf32>
    %413 = arith.subf %383, %412 : vector<32x128xf32>
    %cst_213 = arith.constant 5.000000e+00 : f32
    %414 = vector.broadcast %cst_213 : f32 to vector<32x128xf32>
    %415 = arith.select %411, %414, %413 : vector<32x128xi1>, vector<32x128xf32>
    %cst_214 = arith.constant -6.500000e+01 : f32
    %416 = vector.broadcast %cst_214 : f32 to vector<32x128xf32>
    %417 = arith.select %411, %416, %409 : vector<32x128xi1>, vector<32x128xf32>
    %cst_215 = arith.constant 0.990049839 : f32
    %418 = vector.broadcast %cst_215 : f32 to vector<32x128xf32>
    %419 = arith.mulf %389, %418 : vector<32x128xf32>
    %cst_216 = arith.constant 1.000000e+00 : f32
    %420 = vector.broadcast %cst_216 : f32 to vector<32x128xf32>
    %421 = arith.select %411, %420, %419 : vector<32x128xi1>, vector<32x128xf32>
    %422 = arith.extui %411 : vector<32x128xi1> to vector<32x128xi32>
    %423 = arith.sitofp %422 : vector<32x128xi32> to vector<32x128xf32>
    %c12_217 = arith.constant 12 : index
    %c0_218 = arith.constant 0 : index
    %c0_219 = arith.constant 0 : index
    %424 = vector.load %arg4[%c12_217, %c0_218, %c0_219] : memref<16x32x128xf32, #tpu.memory_space<vmem>>, vector<1x32x128xf32>
    %425 = vector.shape_cast %424 : vector<1x32x128xf32> to vector<32x128xf32>
    %426 = vector.shape_cast %423 : vector<32x128xf32> to vector<1x32x128xf32>
    tpu.vector_store %arg4[%c12_217, %c0_218, %c0_219], %426 {strides = array<i32>} : memref<16x32x128xf32, #tpu.memory_space<vmem>>, vector<1x32x128xf32>,
    %c13 = arith.constant 13 : index
    %c0_220 = arith.constant 0 : index
    %c0_221 = arith.constant 0 : index
    %427 = vector.load %arg1[%c13, %c0_220, %c0_221] : memref<16x32x128xf32, #tpu.memory_space<vmem>>, vector<1x32x128xf32>
    %428 = vector.shape_cast %427 : vector<1x32x128xf32> to vector<32x128xf32>
    %cst_222 = arith.constant -6.500000e+01 : f32
    %429 = vector.broadcast %cst_222 : f32 to vector<32x128xf32>
    %430 = arith.subf %417, %429 : vector<32x128xf32>
    %cst_223 = arith.constant 0.999000489 : f32
    %431 = vector.broadcast %cst_223 : f32 to vector<32x128xf32>
    %432 = arith.mulf %431, %430 : vector<32x128xf32>
    %cst_224 = arith.constant -6.500000e+01 : f32
    %433 = vector.broadcast %cst_224 : f32 to vector<32x128xf32>
    %434 = arith.addf %432, %433 : vector<32x128xf32>
    %cst_225 = arith.constant 0.951229453 : f32
    %435 = vector.broadcast %cst_225 : f32 to vector<32x128xf32>
    %436 = arith.mulf %405, %435 : vector<32x128xf32>
    %437 = arith.addf %436, %428 : vector<32x128xf32>
    %cst_226 = arith.constant 0.000000e+00 : f32
    %438 = vector.broadcast %cst_226 : f32 to vector<32x128xf32>
    %439 = arith.cmpf ole, %415, %438 : vector<32x128xf32>
    %440 = arith.addf %434, %437 : vector<32x128xf32>
    %441 = arith.select %439, %440, %434 : vector<32x128xi1>, vector<32x128xf32>
    %cst_227 = arith.constant -5.200000e+01 : f32
    %442 = vector.broadcast %cst_227 : f32 to vector<32x128xf32>
    %443 = arith.cmpf oge, %441, %442 : vector<32x128xf32>
    %cst_228 = arith.constant 1.000000e-01 : f32
    %444 = vector.broadcast %cst_228 : f32 to vector<32x128xf32>
    %445 = arith.subf %415, %444 : vector<32x128xf32>
    %cst_229 = arith.constant 5.000000e+00 : f32
    %446 = vector.broadcast %cst_229 : f32 to vector<32x128xf32>
    %447 = arith.select %443, %446, %445 : vector<32x128xi1>, vector<32x128xf32>
    %cst_230 = arith.constant -6.500000e+01 : f32
    %448 = vector.broadcast %cst_230 : f32 to vector<32x128xf32>
    %449 = arith.select %443, %448, %441 : vector<32x128xi1>, vector<32x128xf32>
    %cst_231 = arith.constant 0.990049839 : f32
    %450 = vector.broadcast %cst_231 : f32 to vector<32x128xf32>
    %451 = arith.mulf %421, %450 : vector<32x128xf32>
    %cst_232 = arith.constant 1.000000e+00 : f32
    %452 = vector.broadcast %cst_232 : f32 to vector<32x128xf32>
    %453 = arith.select %443, %452, %451 : vector<32x128xi1>, vector<32x128xf32>
    %454 = arith.extui %443 : vector<32x128xi1> to vector<32x128xi32>
    %455 = arith.sitofp %454 : vector<32x128xi32> to vector<32x128xf32>
    %c13_233 = arith.constant 13 : index
    %c0_234 = arith.constant 0 : index
    %c0_235 = arith.constant 0 : index
    %456 = vector.load %arg4[%c13_233, %c0_234, %c0_235] : memref<16x32x128xf32, #tpu.memory_space<vmem>>, vector<1x32x128xf32>
    %457 = vector.shape_cast %456 : vector<1x32x128xf32> to vector<32x128xf32>
    %458 = vector.shape_cast %455 : vector<32x128xf32> to vector<1x32x128xf32>
    tpu.vector_store %arg4[%c13_233, %c0_234, %c0_235], %458 {strides = array<i32>} : memref<16x32x128xf32, #tpu.memory_space<vmem>>, vector<1x32x128xf32>,
    %c14 = arith.constant 14 : index
    %c0_236 = arith.constant 0 : index
    %c0_237 = arith.constant 0 : index
    %459 = vector.load %arg1[%c14, %c0_236, %c0_237] : memref<16x32x128xf32, #tpu.memory_space<vmem>>, vector<1x32x128xf32>
    %460 = vector.shape_cast %459 : vector<1x32x128xf32> to vector<32x128xf32>
    %cst_238 = arith.constant -6.500000e+01 : f32
    %461 = vector.broadcast %cst_238 : f32 to vector<32x128xf32>
    %462 = arith.subf %449, %461 : vector<32x128xf32>
    %cst_239 = arith.constant 0.999000489 : f32
    %463 = vector.broadcast %cst_239 : f32 to vector<32x128xf32>
    %464 = arith.mulf %463, %462 : vector<32x128xf32>
    %cst_240 = arith.constant -6.500000e+01 : f32
    %465 = vector.broadcast %cst_240 : f32 to vector<32x128xf32>
    %466 = arith.addf %464, %465 : vector<32x128xf32>
    %cst_241 = arith.constant 0.951229453 : f32
    %467 = vector.broadcast %cst_241 : f32 to vector<32x128xf32>
    %468 = arith.mulf %437, %467 : vector<32x128xf32>
    %469 = arith.addf %468, %460 : vector<32x128xf32>
    %cst_242 = arith.constant 0.000000e+00 : f32
    %470 = vector.broadcast %cst_242 : f32 to vector<32x128xf32>
    %471 = arith.cmpf ole, %447, %470 : vector<32x128xf32>
    %472 = arith.addf %466, %469 : vector<32x128xf32>
    %473 = arith.select %471, %472, %466 : vector<32x128xi1>, vector<32x128xf32>
    %cst_243 = arith.constant -5.200000e+01 : f32
    %474 = vector.broadcast %cst_243 : f32 to vector<32x128xf32>
    %475 = arith.cmpf oge, %473, %474 : vector<32x128xf32>
    %cst_244 = arith.constant 1.000000e-01 : f32
    %476 = vector.broadcast %cst_244 : f32 to vector<32x128xf32>
    %477 = arith.subf %447, %476 : vector<32x128xf32>
    %cst_245 = arith.constant 5.000000e+00 : f32
    %478 = vector.broadcast %cst_245 : f32 to vector<32x128xf32>
    %479 = arith.select %475, %478, %477 : vector<32x128xi1>, vector<32x128xf32>
    %cst_246 = arith.constant -6.500000e+01 : f32
    %480 = vector.broadcast %cst_246 : f32 to vector<32x128xf32>
    %481 = arith.select %475, %480, %473 : vector<32x128xi1>, vector<32x128xf32>
    %cst_247 = arith.constant 0.990049839 : f32
    %482 = vector.broadcast %cst_247 : f32 to vector<32x128xf32>
    %483 = arith.mulf %453, %482 : vector<32x128xf32>
    %cst_248 = arith.constant 1.000000e+00 : f32
    %484 = vector.broadcast %cst_248 : f32 to vector<32x128xf32>
    %485 = arith.select %475, %484, %483 : vector<32x128xi1>, vector<32x128xf32>
    %486 = arith.extui %475 : vector<32x128xi1> to vector<32x128xi32>
    %487 = arith.sitofp %486 : vector<32x128xi32> to vector<32x128xf32>
    %c14_249 = arith.constant 14 : index
    %c0_250 = arith.constant 0 : index
    %c0_251 = arith.constant 0 : index
    %488 = vector.load %arg4[%c14_249, %c0_250, %c0_251] : memref<16x32x128xf32, #tpu.memory_space<vmem>>, vector<1x32x128xf32>
    %489 = vector.shape_cast %488 : vector<1x32x128xf32> to vector<32x128xf32>
    %490 = vector.shape_cast %487 : vector<32x128xf32> to vector<1x32x128xf32>
    tpu.vector_store %arg4[%c14_249, %c0_250, %c0_251], %490 {strides = array<i32>} : memref<16x32x128xf32, #tpu.memory_space<vmem>>, vector<1x32x128xf32>,
    %c15 = arith.constant 15 : index
    %c0_252 = arith.constant 0 : index
    %c0_253 = arith.constant 0 : index
    %491 = vector.load %arg1[%c15, %c0_252, %c0_253] : memref<16x32x128xf32, #tpu.memory_space<vmem>>, vector<1x32x128xf32>
    %492 = vector.shape_cast %491 : vector<1x32x128xf32> to vector<32x128xf32>
    %cst_254 = arith.constant -6.500000e+01 : f32
    %493 = vector.broadcast %cst_254 : f32 to vector<32x128xf32>
    %494 = arith.subf %481, %493 : vector<32x128xf32>
    %cst_255 = arith.constant 0.999000489 : f32
    %495 = vector.broadcast %cst_255 : f32 to vector<32x128xf32>
    %496 = arith.mulf %495, %494 : vector<32x128xf32>
    %cst_256 = arith.constant -6.500000e+01 : f32
    %497 = vector.broadcast %cst_256 : f32 to vector<32x128xf32>
    %498 = arith.addf %496, %497 : vector<32x128xf32>
    %cst_257 = arith.constant 0.951229453 : f32
    %499 = vector.broadcast %cst_257 : f32 to vector<32x128xf32>
    %500 = arith.mulf %469, %499 : vector<32x128xf32>
    %501 = arith.addf %500, %492 : vector<32x128xf32>
    %cst_258 = arith.constant 0.000000e+00 : f32
    %502 = vector.broadcast %cst_258 : f32 to vector<32x128xf32>
    %503 = arith.cmpf ole, %479, %502 : vector<32x128xf32>
    %504 = arith.addf %498, %501 : vector<32x128xf32>
    %505 = arith.select %503, %504, %498 : vector<32x128xi1>, vector<32x128xf32>
    %cst_259 = arith.constant -5.200000e+01 : f32
    %506 = vector.broadcast %cst_259 : f32 to vector<32x128xf32>
    %507 = arith.cmpf oge, %505, %506 : vector<32x128xf32>
    %cst_260 = arith.constant 1.000000e-01 : f32
    %508 = vector.broadcast %cst_260 : f32 to vector<32x128xf32>
    %509 = arith.subf %479, %508 : vector<32x128xf32>
    %cst_261 = arith.constant 5.000000e+00 : f32
    %510 = vector.broadcast %cst_261 : f32 to vector<32x128xf32>
    %511 = arith.select %507, %510, %509 : vector<32x128xi1>, vector<32x128xf32>
    %cst_262 = arith.constant -6.500000e+01 : f32
    %512 = vector.broadcast %cst_262 : f32 to vector<32x128xf32>
    %513 = arith.select %507, %512, %505 : vector<32x128xi1>, vector<32x128xf32>
    %cst_263 = arith.constant 0.990049839 : f32
    %514 = vector.broadcast %cst_263 : f32 to vector<32x128xf32>
    %515 = arith.mulf %485, %514 : vector<32x128xf32>
    %cst_264 = arith.constant 1.000000e+00 : f32
    %516 = vector.broadcast %cst_264 : f32 to vector<32x128xf32>
    %517 = arith.select %507, %516, %515 : vector<32x128xi1>, vector<32x128xf32>
    %518 = arith.extui %507 : vector<32x128xi1> to vector<32x128xi32>
    %519 = arith.sitofp %518 : vector<32x128xi32> to vector<32x128xf32>
    %c15_265 = arith.constant 15 : index
    %c0_266 = arith.constant 0 : index
    %c0_267 = arith.constant 0 : index
    %520 = vector.load %arg4[%c15_265, %c0_266, %c0_267] : memref<16x32x128xf32, #tpu.memory_space<vmem>>, vector<1x32x128xf32>
    %521 = vector.shape_cast %520 : vector<1x32x128xf32> to vector<32x128xf32>
    %522 = vector.shape_cast %519 : vector<32x128xf32> to vector<1x32x128xf32>
    tpu.vector_store %arg4[%c15_265, %c0_266, %c0_267], %522 {strides = array<i32>} : memref<16x32x128xf32, #tpu.memory_space<vmem>>, vector<1x32x128xf32>,
    %c0_268 = arith.constant 0 : index
    %c0_269 = arith.constant 0 : index
    %c0_270 = arith.constant 0 : index
    %523 = vector.load %arg3[%c0_268, %c0_269, %c0_270] : memref<4x32x128xf32, #tpu.memory_space<vmem>>, vector<1x32x128xf32>
    %524 = vector.shape_cast %523 : vector<1x32x128xf32> to vector<32x128xf32>
    %525 = vector.shape_cast %513 : vector<32x128xf32> to vector<1x32x128xf32>
    tpu.vector_store %arg3[%c0_268, %c0_269, %c0_270], %525 {strides = array<i32>} : memref<4x32x128xf32, #tpu.memory_space<vmem>>, vector<1x32x128xf32>,
    %c1_271 = arith.constant 1 : index
    %c0_272 = arith.constant 0 : index
    %c0_273 = arith.constant 0 : index
    %526 = vector.load %arg3[%c1_271, %c0_272, %c0_273] : memref<4x32x128xf32, #tpu.memory_space<vmem>>, vector<1x32x128xf32>
    %527 = vector.shape_cast %526 : vector<1x32x128xf32> to vector<32x128xf32>
    %528 = vector.shape_cast %501 : vector<32x128xf32> to vector<1x32x128xf32>
    tpu.vector_store %arg3[%c1_271, %c0_272, %c0_273], %528 {strides = array<i32>} : memref<4x32x128xf32, #tpu.memory_space<vmem>>, vector<1x32x128xf32>,
    %c2_274 = arith.constant 2 : index
    %c0_275 = arith.constant 0 : index
    %c0_276 = arith.constant 0 : index
    %529 = vector.load %arg3[%c2_274, %c0_275, %c0_276] : memref<4x32x128xf32, #tpu.memory_space<vmem>>, vector<1x32x128xf32>
    %530 = vector.shape_cast %529 : vector<1x32x128xf32> to vector<32x128xf32>
    %531 = vector.shape_cast %511 : vector<32x128xf32> to vector<1x32x128xf32>
    tpu.vector_store %arg3[%c2_274, %c0_275, %c0_276], %531 {strides = array<i32>} : memref<4x32x128xf32, #tpu.memory_space<vmem>>, vector<1x32x128xf32>,
    %c3_277 = arith.constant 3 : index
    %c0_278 = arith.constant 0 : index
    %c0_279 = arith.constant 0 : index
    %532 = vector.load %arg3[%c3_277, %c0_278, %c0_279] : memref<4x32x128xf32, #tpu.memory_space<vmem>>, vector<1x32x128xf32>
    %533 = vector.shape_cast %532 : vector<1x32x128xf32> to vector<32x128xf32>
    %534 = vector.shape_cast %517 : vector<32x128xf32> to vector<1x32x128xf32>
    tpu.vector_store %arg3[%c3_277, %c0_278, %c0_279], %534 {strides = array<i32>} : memref<4x32x128xf32, #tpu.memory_space<vmem>>, vector<1x32x128xf32>,
    return
  }
  func.func @transform_0(%arg0: i32) -> (i32, i32, i32) {
    %c0_i32 = arith.constant 0 : i32
    %c0_i32_0 = arith.constant 0 : i32
    %c0_i32_1 = arith.constant 0 : i32
    return %arg0, %c0_i32, %c0_i32_0 : i32, i32, i32
  }
  func.func @transform_1(%arg0: i32) -> (i32, i32, i32) {
    %c0_i32 = arith.constant 0 : i32
    %c0_i32_0 = arith.constant 0 : i32
    %c0_i32_1 = arith.constant 0 : i32
    %c0_i32_2 = arith.constant 0 : i32
    return %c0_i32, %c0_i32_0, %c0_i32_1 : i32, i32, i32
  }
  func.func @transform_2(%arg0: i32) -> (i32, i32, i32) {
    %c0_i32 = arith.constant 0 : i32
    %c0_i32_0 = arith.constant 0 : i32
    %c0_i32_1 = arith.constant 0 : i32
    %c0_i32_2 = arith.constant 0 : i32
    return %c0_i32, %c0_i32_0, %c0_i32_1 : i32, i32, i32
  }
  func.func @transform_3(%arg0: i32) -> (i32, i32, i32) {
    %c0_i32 = arith.constant 0 : i32
    %c0_i32_0 = arith.constant 0 : i32
    %c0_i32_1 = arith.constant 0 : i32
    return %arg0, %c0_i32, %c0_i32_0 : i32, i32, i32
  }
}

</mosaic_0001>

<llo_original>
// kernel: tpu_custom_call.1
$region0: #{tpu_custom_call.1}
  #allocation0 [shape = 'u32[]', space=smem, size = 0x4, offset = 0x4, fixed_abs, tag = 'smem constant byte address 0x4 - core index']
  #allocation1 [shape = 'u32[144,128]{1,0:T(1,128)}', space=vmem, size = 0x12000, scoped, tag = 'internal scratch']
  %s0 = inlined_call_operand.hbm [shape: f32[16,32,128], index: 0, kind: input, shape index: {}]
  %s1 = inlined_call_operand.hbm [shape: f32[4,32,128], index: 1, kind: input, shape index: {}, may-alias: {1,2}]
  %s2 = inlined_call_operand.hbm [shape: f32[4,32,128], index: 2, kind: output, shape index: {0}, may-alias: {1,2}]
  %s3 = inlined_call_operand.hbm [shape: f32[16,32,128], index: 3, kind: output, shape index: {1}]
  %4 = xla_tuple %s2, %s3
  %s5 = sld [smem:[#allocation0]]
  $region38: #{tpu_custom_call.1} parent=0
    _
  %s7 = ssub.s32 1, %s5
  %s8 = scalar_select 0, %s7, %s5
  $region1: #{tpu_custom_call.1} parent=0
    #allocation2 [shape = 'u8[262144]{0}', space=vmem, size = 0x40000, scoped, tag = 'input window, operand 0, single buffered']
    #allocation3 [shape = 's32[1]{0}', space=sflag, size = 0x4, scoped, tag = 'scoped memory for tpu_custom_call.1']
    #allocation4 [shape = 's32[1]{0}', space=sflag, size = 0x4, scoped, tag = 'scoped memory for tpu_custom_call.1']
    #allocation5 [shape = 'u8[65536]{0}', space=vmem, size = 0x10000, scoped, tag = 'input window, operand 1, single buffered']
    #allocation6 [shape = 's32[1]{0}', space=sflag, size = 0x4, scoped, tag = 'scoped memory for tpu_custom_call.1']
    #allocation7 [shape = 'u8[65536]{0}', space=vmem, size = 0x10000, scoped, tag = 'output window, operand 0, single buffered']
    #allocation8 [shape = 'u8[262144]{0}', space=vmem, size = 0x40000, scoped, tag = 'output window, operand 1, single buffered']
    #allocation9 [shape = 's32[1]{0}', space=sflag, size = 0x4, scoped, tag = 'scoped memory for tpu_custom_call.1']
    %9 = vsyncpa [#allocation3], 0
    %10 = vsyncpa [#allocation6], 0
    %11 = vsyncpa [#allocation4], 0
    %12 = vsyncpa [#allocation9], 0
    // Predicated region
    $region2: #{tpu_custom_call.1} parent=1 // pred_check
      _
    $region3: #{tpu_custom_call.1} parent=1 // pred_check_branch
      %14 = sbr.rel (0) target = $region5
    $region4: #{tpu_custom_call.1} parent=1 // pred_region
      %s16 = ssub.s32 8192, 8192
      %17 = vsyncadd [#allocation3], %s16
      %s18 = sshll.u32 [#allocation2], 4
      %s19 = int_to_ptr.vmem [resolvable:$true] %s18
      %24 = dma.hbm_to_vmem [thread:$0]  %s0, 8192, %s19, [#allocation3], 128, 128, 8
    $region5: #{tpu_custom_call.1} parent=1 // pred_fallthru
      _
    // Predicated region
    $region6: #{tpu_custom_call.1} parent=1 // pred_check
      _
    $region7: #{tpu_custom_call.1} parent=1 // pred_check_branch
      %26 = sbr.rel (0) target = $region9
    $region8: #{tpu_custom_call.1} parent=1 // pred_region
      %s28 = ssub.s32 2048, 2048
      %29 = vsyncadd [#allocation6], %s28
      %s30 = sshll.u32 [#allocation5], 4
      %s31 = int_to_ptr.vmem [resolvable:$true] %s30
      %36 = dma.hbm_to_vmem [thread:$0]  %s1, 2048, %s31, [#allocation6], 128, 128, 8
    $region9: #{tpu_custom_call.1} parent=1 // pred_fallthru
      _
    // Predicated region
    $region10: #{tpu_custom_call.1} parent=1 // pred_check
      _
    $region11: #{tpu_custom_call.1} parent=1 // pred_check_branch
      %38 = sbr.rel (0) target = $region13
    $region12: #{tpu_custom_call.1} parent=1 // pred_region
      %39 = dma.done [#allocation3], 8192
    $region13: #{tpu_custom_call.1} parent=1 // pred_fallthru
      _
    // Predicated region
    $region14: #{tpu_custom_call.1} parent=1 // pred_check
      _
    $region15: #{tpu_custom_call.1} parent=1 // pred_check_branch
      %41 = sbr.rel (0) target = $region17
    $region16: #{tpu_custom_call.1} parent=1 // pred_region
      %42 = dma.done [#allocation6], 2048
    $region17: #{tpu_custom_call.1} parent=1 // pred_fallthru
      _
    %p43 = scmp.eq.s32.totalorder 0, 0
    // Predicated region
    $region18: #{tpu_custom_call.1} parent=1 // pred_check
      %p44 = pneg %p43
    $region19: #{tpu_custom_call.1} parent=1 // pred_check_branch
      %46 = sbr.rel (%p44) target = $region21
    $region20: #{tpu_custom_call.1} parent=1 // pred_region
      %v47 = vld [vmem:[#allocation5] sm:$0xff]
      %v48 = vld [vmem:[#allocation5 + $0x8] sm:$0xff]
      %v49 = vld [vmem:[#allocation5 + $0x10] sm:$0xff]
      %v50 = vld [vmem:[#allocation5 + $0x18] sm:$0xff]
      %v51 = vld [vmem:[#allocation5 + $0x20] sm:$0xff]
      %v52 = vld [vmem:[#allocation5 + $0x28] sm:$0xff]
      %v53 = vld [vmem:[#allocation5 + $0x30] sm:$0xff]
      %v54 = vld [vmem:[#allocation5 + $0x38] sm:$0xff]
      %v55 = vld [vmem:[#allocation5 + $0x40] sm:$0xff]
      %v56 = vld [vmem:[#allocation5 + $0x48] sm:$0xff]
      %v57 = vld [vmem:[#allocation5 + $0x50] sm:$0xff]
      %v58 = vld [vmem:[#allocation5 + $0x58] sm:$0xff]
      %v59 = vld [vmem:[#allocation5 + $0x60] sm:$0xff]
      %v60 = vld [vmem:[#allocation5 + $0x68] sm:$0xff]
      %v61 = vld [vmem:[#allocation5 + $0x70] sm:$0xff]
      %v62 = vld [vmem:[#allocation5 + $0x78] sm:$0xff]
      %63 = vst [vmem:[#allocation7] sm:$0xff] %v47
      %64 = vst [vmem:[#allocation7 + $0x8] sm:$0xff] %v48
      %65 = vst [vmem:[#allocation7 + $0x10] sm:$0xff] %v49
      %66 = vst [vmem:[#allocation7 + $0x18] sm:$0xff] %v50
      %67 = vst [vmem:[#allocation7 + $0x20] sm:$0xff] %v51
      %68 = vst [vmem:[#allocation7 + $0x28] sm:$0xff] %v52
      %69 = vst [vmem:[#allocation7 + $0x30] sm:$0xff] %v53
      %70 = vst [vmem:[#allocation7 + $0x38] sm:$0xff] %v54
      %71 = vst [vmem:[#allocation7 + $0x40] sm:$0xff] %v55
      %72 = vst [vmem:[#allocation7 + $0x48] sm:$0xff] %v56
      %73 = vst [vmem:[#allocation7 + $0x50] sm:$0xff] %v57
      %74 = vst [vmem:[#allocation7 + $0x58] sm:$0xff] %v58
      %75 = vst [vmem:[#allocation7 + $0x60] sm:$0xff] %v59
      %76 = vst [vmem:[#allocation7 + $0x68] sm:$0xff] %v60
      %77 = vst [vmem:[#allocation7 + $0x70] sm:$0xff] %v61
      %78 = vst [vmem:[#allocation7 + $0x78] sm:$0xff] %v62
    $region21: #{tpu_custom_call.1} parent=1 // pred_fallthru
      _
    %v79 = vld [vmem:[#allocation7] sm:$0xff]
    %v80 = vld [vmem:[#allocation7 + $0x8] sm:$0xff]
    %v81 = vld [vmem:[#allocation7 + $0x10] sm:$0xff]
    %v82 = vld [vmem:[#allocation7 + $0x18] sm:$0xff]
    %s83 = scalar_lea.vmem [#allocation7], 32
    %v84 = vld [vmem:[%s83] sm:$0xff]
    %v85 = vld [vmem:[%s83 + $0x8] sm:$0xff]
    %v86 = vld [vmem:[%s83 + $0x10] sm:$0xff]
    %v87 = vld [vmem:[%s83 + $0x18] sm:$0xff]
    %s88 = scalar_lea.vmem [#allocation7], 64
    %v89 = vld [vmem:[%s88] sm:$0xff]
    %v90 = vld [vmem:[%s88 + $0x8] sm:$0xff]
    %v91 = vld [vmem:[%s88 + $0x10] sm:$0xff]
    %v92 = vld [vmem:[%s88 + $0x18] sm:$0xff]
    %s93 = scalar_lea.vmem [#allocation7], 96
    %v94 = vld [vmem:[%s93] sm:$0xff]
    %v95 = vld [vmem:[%s93 + $0x8] sm:$0xff]
    %v96 = vld [vmem:[%s93 + $0x10] sm:$0xff]
    %v97 = vld [vmem:[%s93 + $0x18] sm:$0xff]
    %v98 = vld [vmem:[#allocation2] sm:$0xff]
    %v99 = vld [vmem:[#allocation2 + $0x8] sm:$0xff]
    %v100 = vld [vmem:[#allocation2 + $0x10] sm:$0xff]
    %v101 = vld [vmem:[#allocation2 + $0x18] sm:$0xff]
    %v102 = vsub.f32 %v79, -65.0
    %v103 = vsub.f32 %v80, -65.0
    %v104 = vsub.f32 %v81, -65.0
    %v105 = vsub.f32 %v82, -65.0
    %v106 = vmul.f32 %v102, 0.9990005
    %v107 = vmul.f32 %v103, 0.9990005
    %v108 = vmul.f32 %v104, 0.9990005
    %v109 = vmul.f32 %v105, 0.9990005
    %v110 = vadd.f32 %v106, -65.0
    %v111 = vadd.f32 %v107, -65.0
    %v112 = vadd.f32 %v108, -65.0
    %v113 = vadd.f32 %v109, -65.0
    %v114 = vmul.f32 %v84, 0.95122945
    %v115 = vmul.f32 %v85, 0.95122945
    %v116 = vmul.f32 %v86, 0.95122945
    %v117 = vmul.f32 %v87, 0.95122945
    %v118 = vadd.f32 %v114, %v98
    %v119 = vadd.f32 %v115, %v99
    %v120 = vadd.f32 %v116, %v100
    %v121 = vadd.f32 %v117, %v101
    %vm122 = vcmp.le.f32.partialorder %v89, 0.0
    %vm123 = vcmp.le.f32.partialorder %v90, 0.0
    %vm124 = vcmp.le.f32.partialorder %v91, 0.0
    %vm125 = vcmp.le.f32.partialorder %v92, 0.0
    %v126 = vadd.f32 %v110, %v118
    %v127 = vadd.f32 %v111, %v119
    %v128 = vadd.f32 %v112, %v120
    %v129 = vadd.f32 %v113, %v121
    %v130 = vsel %vm122, %v126, %v110
    %v131 = vsel %vm123, %v127, %v111
    %v132 = vsel %vm124, %v128, %v112
    %v133 = vsel %vm125, %v129, %v113
    %vm134 = vcmp.ge.f32.partialorder %v130, -52.0
    %vm135 = vcmp.ge.f32.partialorder %v131, -52.0
    %vm136 = vcmp.ge.f32.partialorder %v132, -52.0
    %vm137 = vcmp.ge.f32.partialorder %v133, -52.0
    %v138 = vsub.f32 %v89, 0.1
    %v139 = vsub.f32 %v90, 0.1
    %v140 = vsub.f32 %v91, 0.1
    %v141 = vsub.f32 %v92, 0.1
    %v142 = vsel %vm134, 5.0, %v138
    %v143 = vsel %vm135, 5.0, %v139
    %v144 = vsel %vm136, 5.0, %v140
    %v145 = vsel %vm137, 5.0, %v141
    %v146 = vsel %vm134, -65.0, %v130
    %v147 = vsel %vm135, -65.0, %v131
    %v148 = vsel %vm136, -65.0, %v132
    %v149 = vsel %vm137, -65.0, %v133
    %v150 = vmul.f32 %v94, 0.99004984
    %v151 = vmul.f32 %v95, 0.99004984
    %v152 = vmul.f32 %v96, 0.99004984
    %v153 = vmul.f32 %v97, 0.99004984
    %v154 = vsel %vm134, 1.0, %v150
    %v155 = vsel %vm135, 1.0, %v151
    %v156 = vsel %vm136, 1.0, %v152
    %v157 = vsel %vm137, 1.0, %v153
    %v158 = vsel %vm134, 1, 0
    %v159 = vsel %vm135, 1, 0
    %v160 = vsel %vm136, 1, 0
    %v161 = vsel %vm137, 1, 0
    %v162 = vcvt.s32.f32 %v158
    %v163 = vcvt.s32.f32 %v159
    %v164 = vcvt.s32.f32 %v160
    %v165 = vcvt.s32.f32 %v161
    %166 = vst [vmem:[#allocation8] sm:$0xff] %v162
    %167 = vst [vmem:[#allocation8 + $0x8] sm:$0xff] %v163
    %168 = vst [vmem:[#allocation8 + $0x10] sm:$0xff] %v164
    %169 = vst [vmem:[#allocation8 + $0x18] sm:$0xff] %v165
    %s170 = scalar_lea.vmem [#allocation2], 32
    %v171 = vld [vmem:[%s170] sm:$0xff]
    %v172 = vld [vmem:[%s170 + $0x8] sm:$0xff]
    %v173 = vld [vmem:[%s170 + $0x10] sm:$0xff]
    %v174 = vld [vmem:[%s170 + $0x18] sm:$0xff]
    %v175 = vsub.f32 %v146, -65.0
    %v176 = vsub.f32 %v147, -65.0
    %v177 = vsub.f32 %v148, -65.0
    %v178 = vsub.f32 %v149, -65.0
    %v179 = vmul.f32 %v175, 0.9990005
    %v180 = vmul.f32 %v176, 0.9990005
    %v181 = vmul.f32 %v177, 0.9990005
    %v182 = vmul.f32 %v178, 0.9990005
    %v183 = vadd.f32 %v179, -65.0
    %v184 = vadd.f32 %v180, -65.0
    %v185 = vadd.f32 %v181, -65.0
    %v186 = vadd.f32 %v182, -65.0
    %v187 = vmul.f32 %v118, 0.95122945
    %v188 = vmul.f32 %v119, 0.95122945
    %v189 = vmul.f32 %v120, 0.95122945
    %v190 = vmul.f32 %v121, 0.95122945
    %v191 = vadd.f32 %v187, %v171
    %v192 = vadd.f32 %v188, %v172
    %v193 = vadd.f32 %v189, %v173
    %v194 = vadd.f32 %v190, %v174
    %vm195 = vcmp.le.f32.partialorder %v142, 0.0
    %vm196 = vcmp.le.f32.partialorder %v143, 0.0
    %vm197 = vcmp.le.f32.partialorder %v144, 0.0
    %vm198 = vcmp.le.f32.partialorder %v145, 0.0
    %v199 = vadd.f32 %v183, %v191
    %v200 = vadd.f32 %v184, %v192
    %v201 = vadd.f32 %v185, %v193
    %v202 = vadd.f32 %v186, %v194
    %v203 = vsel %vm195, %v199, %v183
    %v204 = vsel %vm196, %v200, %v184
    %v205 = vsel %vm197, %v201, %v185
    %v206 = vsel %vm198, %v202, %v186
    %vm207 = vcmp.ge.f32.partialorder %v203, -52.0
    %vm208 = vcmp.ge.f32.partialorder %v204, -52.0
    %vm209 = vcmp.ge.f32.partialorder %v205, -52.0
    %vm210 = vcmp.ge.f32.partialorder %v206, -52.0
    %v211 = vsub.f32 %v142, 0.1
    %v212 = vsub.f32 %v143, 0.1
    %v213 = vsub.f32 %v144, 0.1
    %v214 = vsub.f32 %v145, 0.1
    %v215 = vsel %vm207, 5.0, %v211
    %v216 = vsel %vm208, 5.0, %v212
    %v217 = vsel %vm209, 5.0, %v213
    %v218 = vsel %vm210, 5.0, %v214
    %v219 = vsel %vm207, -65.0, %v203
    %v220 = vsel %vm208, -65.0, %v204
    %v221 = vsel %vm209, -65.0, %v205
    %v222 = vsel %vm210, -65.0, %v206
    %v223 = vmul.f32 %v154, 0.99004984
    %v224 = vmul.f32 %v155, 0.99004984
    %v225 = vmul.f32 %v156, 0.99004984
    %v226 = vmul.f32 %v157, 0.99004984
    %v227 = vsel %vm207, 1.0, %v223
    %v228 = vsel %vm208, 1.0, %v224
    %v229 = vsel %vm209, 1.0, %v225
    %v230 = vsel %vm210, 1.0, %v226
    %v231 = vsel %vm207, 1, 0
    %v232 = vsel %vm208, 1, 0
    %v233 = vsel %vm209, 1, 0
    %v234 = vsel %vm210, 1, 0
    %v235 = vcvt.s32.f32 %v231
    %v236 = vcvt.s32.f32 %v232
    %v237 = vcvt.s32.f32 %v233
    %v238 = vcvt.s32.f32 %v234
    %s239 = scalar_lea.vmem [#allocation8], 32
    %240 = vst [vmem:[%s239] sm:$0xff] %v235
    %241 = vst [vmem:[%s239 + $0x8] sm:$0xff] %v236
    %242 = vst [vmem:[%s239 + $0x10] sm:$0xff] %v237
    %243 = vst [vmem:[%s239 + $0x18] sm:$0xff] %v238
    %s244 = scalar_lea.vmem [#allocation2], 64
    %v245 = vld [vmem:[%s244] sm:$0xff]
    %v246 = vld [vmem:[%s244 + $0x8] sm:$0xff]
    %v247 = vld [vmem:[%s244 + $0x10] sm:$0xff]
    %v248 = vld [vmem:[%s244 + $0x18] sm:$0xff]
    %v249 = vsub.f32 %v219, -65.0
    %v250 = vsub.f32 %v220, -65.0
    %v251 = vsub.f32 %v221, -65.0
    %v252 = vsub.f32 %v222, -65.0
    %v253 = vmul.f32 %v249, 0.9990005
    %v254 = vmul.f32 %v250, 0.9990005
    %v255 = vmul.f32 %v251, 0.9990005
    %v256 = vmul.f32 %v252, 0.9990005
    %v257 = vadd.f32 %v253, -65.0
    %v258 = vadd.f32 %v254, -65.0
    %v259 = vadd.f32 %v255, -65.0
    %v260 = vadd.f32 %v256, -65.0
    %v261 = vmul.f32 %v191, 0.95122945
    %v262 = vmul.f32 %v192, 0.95122945
    %v263 = vmul.f32 %v193, 0.95122945
    %v264 = vmul.f32 %v194, 0.95122945
    %v265 = vadd.f32 %v261, %v245
    %v266 = vadd.f32 %v262, %v246
    %v267 = vadd.f32 %v263, %v247
    %v268 = vadd.f32 %v264, %v248
    %vm269 = vcmp.le.f32.partialorder %v215, 0.0
    %vm270 = vcmp.le.f32.partialorder %v216, 0.0
    %vm271 = vcmp.le.f32.partialorder %v217, 0.0
    %vm272 = vcmp.le.f32.partialorder %v218, 0.0
    %v273 = vadd.f32 %v257, %v265
    %v274 = vadd.f32 %v258, %v266
    %v275 = vadd.f32 %v259, %v267
    %v276 = vadd.f32 %v260, %v268
    %v277 = vsel %vm269, %v273, %v257
    %v278 = vsel %vm270, %v274, %v258
    %v279 = vsel %vm271, %v275, %v259
    %v280 = vsel %vm272, %v276, %v260
    %vm281 = vcmp.ge.f32.partialorder %v277, -52.0
    %vm282 = vcmp.ge.f32.partialorder %v278, -52.0
    %vm283 = vcmp.ge.f32.partialorder %v279, -52.0
    %vm284 = vcmp.ge.f32.partialorder %v280, -52.0
    %v285 = vsub.f32 %v215, 0.1
    %v286 = vsub.f32 %v216, 0.1
    %v287 = vsub.f32 %v217, 0.1
    %v288 = vsub.f32 %v218, 0.1
    %v289 = vsel %vm281, 5.0, %v285
    %v290 = vsel %vm282, 5.0, %v286
    %v291 = vsel %vm283, 5.0, %v287
    %v292 = vsel %vm284, 5.0, %v288
    %v293 = vsel %vm281, -65.0, %v277
    %v294 = vsel %vm282, -65.0, %v278
    %v295 = vsel %vm283, -65.0, %v279
    %v296 = vsel %vm284, -65.0, %v280
    %v297 = vmul.f32 %v227, 0.99004984
    %v298 = vmul.f32 %v228, 0.99004984
    %v299 = vmul.f32 %v229, 0.99004984
    %v300 = vmul.f32 %v230, 0.99004984
    %v301 = vsel %vm281, 1.0, %v297
    %v302 = vsel %vm282, 1.0, %v298
    %v303 = vsel %vm283, 1.0, %v299
    %v304 = vsel %vm284, 1.0, %v300
    %v305 = vsel %vm281, 1, 0
    %v306 = vsel %vm282, 1, 0
    %v307 = vsel %vm283, 1, 0
    %v308 = vsel %vm284, 1, 0
    %v309 = vcvt.s32.f32 %v305
    %v310 = vcvt.s32.f32 %v306
    %v311 = vcvt.s32.f32 %v307
    %v312 = vcvt.s32.f32 %v308
    %s313 = scalar_lea.vmem [#allocation8], 64
    %314 = vst [vmem:[%s313] sm:$0xff] %v309
    %315 = vst [vmem:[%s313 + $0x8] sm:$0xff] %v310
    %316 = vst [vmem:[%s313 + $0x10] sm:$0xff] %v311
    %317 = vst [vmem:[%s313 + $0x18] sm:$0xff] %v312
    %s318 = scalar_lea.vmem [#allocation2], 96
    %v319 = vld [vmem:[%s318] sm:$0xff]
    %v320 = vld [vmem:[%s318 + $0x8] sm:$0xff]
    %v321 = vld [vmem:[%s318 + $0x10] sm:$0xff]
    %v322 = vld [vmem:[%s318 + $0x18] sm:$0xff]
    %v323 = vsub.f32 %v293, -65.0
    %v324 = vsub.f32 %v294, -65.0
    %v325 = vsub.f32 %v295, -65.0
    %v326 = vsub.f32 %v296, -65.0
    %v327 = vmul.f32 %v323, 0.9990005
    %v328 = vmul.f32 %v324, 0.9990005
    %v329 = vmul.f32 %v325, 0.9990005
    %v330 = vmul.f32 %v326, 0.9990005
    %v331 = vadd.f32 %v327, -65.0
    %v332 = vadd.f32 %v328, -65.0
    %v333 = vadd.f32 %v329, -65.0
    %v334 = vadd.f32 %v330, -65.0
    %v335 = vmul.f32 %v265, 0.95122945
    %v336 = vmul.f32 %v266, 0.95122945
    %v337 = vmul.f32 %v267, 0.95122945
    %v338 = vmul.f32 %v268, 0.95122945
    %v339 = vadd.f32 %v335, %v319
    %v340 = vadd.f32 %v336, %v320
    %v341 = vadd.f32 %v337, %v321
    %v342 = vadd.f32 %v338, %v322
    %vm343 = vcmp.le.f32.partialorder %v289, 0.0
    %vm344 = vcmp.le.f32.partialorder %v290, 0.0
    %vm345 = vcmp.le.f32.partialorder %v291, 0.0
    %vm346 = vcmp.le.f32.partialorder %v292, 0.0
    %v347 = vadd.f32 %v331, %v339
    %v348 = vadd.f32 %v332, %v340
    %v349 = vadd.f32 %v333, %v341
    %v350 = vadd.f32 %v334, %v342
    %v351 = vsel %vm343, %v347, %v331
    %v352 = vsel %vm344, %v348, %v332
    %v353 = vsel %vm345, %v349, %v333
    %v354 = vsel %vm346, %v350, %v334
    %vm355 = vcmp.ge.f32.partialorder %v351, -52.0
    %vm356 = vcmp.ge.f32.partialorder %v352, -52.0
    %vm357 = vcmp.ge.f32.partialorder %v353, -52.0
    %vm358 = vcmp.ge.f32.partialorder %v354, -52.0
    %v359 = vsub.f32 %v289, 0.1
    %v360 = vsub.f32 %v290, 0.1
    %v361 = vsub.f32 %v291, 0.1
    %v362 = vsub.f32 %v292, 0.1
    %v363 = vsel %vm355, 5.0, %v359
    %v364 = vsel %vm356, 5.0, %v360
    %v365 = vsel %vm357, 5.0, %v361
    %v366 = vsel %vm358, 5.0, %v362
    %v367 = vsel %vm355, -65.0, %v351
    %v368 = vsel %vm356, -65.0, %v352
    %v369 = vsel %vm357, -65.0, %v353
    %v370 = vsel %vm358, -65.0, %v354
    %v371 = vmul.f32 %v301, 0.99004984
    %v372 = vmul.f32 %v302, 0.99004984
    %v373 = vmul.f32 %v303, 0.99004984
    %v374 = vmul.f32 %v304, 0.99004984
    %v375 = vsel %vm355, 1.0, %v371
    %v376 = vsel %vm356, 1.0, %v372
    %v377 = vsel %vm357, 1.0, %v373
    %v378 = vsel %vm358, 1.0, %v374
    %v379 = vsel %vm355, 1, 0
    %v380 = vsel %vm356, 1, 0
    %v381 = vsel %vm357, 1, 0
    %v382 = vsel %vm358, 1, 0
    %v383 = vcvt.s32.f32 %v379
    %v384 = vcvt.s32.f32 %v380
    %v385 = vcvt.s32.f32 %v381
    %v386 = vcvt.s32.f32 %v382
    %s387 = scalar_lea.vmem [#allocation8], 96
    %388 = vst [vmem:[%s387] sm:$0xff] %v383
    %389 = vst [vmem:[%s387 + $0x8] sm:$0xff] %v384
    %390 = vst [vmem:[%s387 + $0x10] sm:$0xff] %v385
    %391 = vst [vmem:[%s387 + $0x18] sm:$0xff] %v386
    %s392 = scalar_lea.vmem [#allocation2], 128
    %v393 = vld [vmem:[%s392] sm:$0xff]
    %v394 = vld [vmem:[%s392 + $0x8] sm:$0xff]
    %v395 = vld [vmem:[%s392 + $0x10] sm:$0xff]
    %v396 = vld [vmem:[%s392 + $0x18] sm:$0xff]
    %v397 = vsub.f32 %v367, -65.0
    %v398 = vsub.f32 %v368, -65.0
    %v399 = vsub.f32 %v369, -65.0
    %v400 = vsub.f32 %v370, -65.0
    %v401 = vmul.f32 %v397, 0.9990005
    %v402 = vmul.f32 %v398, 0.9990005
    %v403 = vmul.f32 %v399, 0.9990005
    %v404 = vmul.f32 %v400, 0.9990005
    %v405 = vadd.f32 %v401, -65.0
    %v406 = vadd.f32 %v402, -65.0
    %v407 = vadd.f32 %v403, -65.0
    %v408 = vadd.f32 %v404, -65.0
    %v409 = vmul.f32 %v339, 0.95122945
    %v410 = vmul.f32 %v340, 0.95122945
    %v411 = vmul.f32 %v341, 0.95122945
    %v412 = vmul.f32 %v342, 0.95122945
    %v413 = vadd.f32 %v409, %v393
    %v414 = vadd.f32 %v410, %v394
    %v415 = vadd.f32 %v411, %v395
    %v416 = vadd.f32 %v412, %v396
    %vm417 = vcmp.le.f32.partialorder %v363, 0.0
    %vm418 = vcmp.le.f32.partialorder %v364, 0.0
    %vm419 = vcmp.le.f32.partialorder %v365, 0.0
    %vm420 = vcmp.le.f32.partialorder %v366, 0.0
    %v421 = vadd.f32 %v405, %v413
    %v422 = vadd.f32 %v406, %v414
    %v423 = vadd.f32 %v407, %v415
    %v424 = vadd.f32 %v408, %v416
    %v425 = vsel %vm417, %v421, %v405
    %v426 = vsel %vm418, %v422, %v406
    %v427 = vsel %vm419, %v423, %v407
    %v428 = vsel %vm420, %v424, %v408
    %vm429 = vcmp.ge.f32.partialorder %v425, -52.0
    %vm430 = vcmp.ge.f32.partialorder %v426, -52.0
    %vm431 = vcmp.ge.f32.partialorder %v427, -52.0
    %vm432 = vcmp.ge.f32.partialorder %v428, -52.0
    %v433 = vsub.f32 %v363, 0.1
    %v434 = vsub.f32 %v364, 0.1
    %v435 = vsub.f32 %v365, 0.1
    %v436 = vsub.f32 %v366, 0.1
    %v437 = vsel %vm429, 5.0, %v433
    %v438 = vsel %vm430, 5.0, %v434
    %v439 = vsel %vm431, 5.0, %v435
    %v440 = vsel %vm432, 5.0, %v436
    %v441 = vsel %vm429, -65.0, %v425
    %v442 = vsel %vm430, -65.0, %v426
    %v443 = vsel %vm431, -65.0, %v427
    %v444 = vsel %vm432, -65.0, %v428
    %v445 = vmul.f32 %v375, 0.99004984
    %v446 = vmul.f32 %v376, 0.99004984
    %v447 = vmul.f32 %v377, 0.99004984
    %v448 = vmul.f32 %v378, 0.99004984
    %v449 = vsel %vm429, 1.0, %v445
    %v450 = vsel %vm430, 1.0, %v446
    %v451 = vsel %vm431, 1.0, %v447
    %v452 = vsel %vm432, 1.0, %v448
    %v453 = vsel %vm429, 1, 0
    %v454 = vsel %vm430, 1, 0
    %v455 = vsel %vm431, 1, 0
    %v456 = vsel %vm432, 1, 0
    %v457 = vcvt.s32.f32 %v453
    %v458 = vcvt.s32.f32 %v454
    %v459 = vcvt.s32.f32 %v455
    %v460 = vcvt.s32.f32 %v456
    %s461 = scalar_lea.vmem [#allocation8], 128
    %462 = vst [vmem:[%s461] sm:$0xff] %v457
    %463 = vst [vmem:[%s461 + $0x8] sm:$0xff] %v458
    %464 = vst [vmem:[%s461 + $0x10] sm:$0xff] %v459
    %465 = vst [vmem:[%s461 + $0x18] sm:$0xff] %v460
    %s466 = scalar_lea.vmem [#allocation2], 160
    %v467 = vld [vmem:[%s466] sm:$0xff]
    %v468 = vld [vmem:[%s466 + $0x8] sm:$0xff]
    %v469 = vld [vmem:[%s466 + $0x10] sm:$0xff]
    %v470 = vld [vmem:[%s466 + $0x18] sm:$0xff]
    %v471 = vsub.f32 %v441, -65.0
    %v472 = vsub.f32 %v442, -65.0
    %v473 = vsub.f32 %v443, -65.0
    %v474 = vsub.f32 %v444, -65.0
    %v475 = vmul.f32 %v471, 0.9990005
    %v476 = vmul.f32 %v472, 0.9990005
    %v477 = vmul.f32 %v473, 0.9990005
    %v478 = vmul.f32 %v474, 0.9990005
    %v479 = vadd.f32 %v475, -65.0
    %v480 = vadd.f32 %v476, -65.0
    %v481 = vadd.f32 %v477, -65.0
    %v482 = vadd.f32 %v478, -65.0
    %v483 = vmul.f32 %v413, 0.95122945
    %v484 = vmul.f32 %v414, 0.95122945
    %v485 = vmul.f32 %v415, 0.95122945
    %v486 = vmul.f32 %v416, 0.95122945
    %v487 = vadd.f32 %v483, %v467
    %v488 = vadd.f32 %v484, %v468
    %v489 = vadd.f32 %v485, %v469
    %v490 = vadd.f32 %v486, %v470
    %vm491 = vcmp.le.f32.partialorder %v437, 0.0
    %vm492 = vcmp.le.f32.partialorder %v438, 0.0
    %vm493 = vcmp.le.f32.partialorder %v439, 0.0
    %vm494 = vcmp.le.f32.partialorder %v440, 0.0
    %v495 = vadd.f32 %v479, %v487
    %v496 = vadd.f32 %v480, %v488
    %v497 = vadd.f32 %v481, %v489
    %v498 = vadd.f32 %v482, %v490
    %v499 = vsel %vm491, %v495, %v479
    %v500 = vsel %vm492, %v496, %v480
    %v501 = vsel %vm493, %v497, %v481
    %v502 = vsel %vm494, %v498, %v482
    %vm503 = vcmp.ge.f32.partialorder %v499, -52.0
    %vm504 = vcmp.ge.f32.partialorder %v500, -52.0
    %vm505 = vcmp.ge.f32.partialorder %v501, -52.0
    %vm506 = vcmp.ge.f32.partialorder %v502, -52.0
    %v507 = vsub.f32 %v437, 0.1
    %v508 = vsub.f32 %v438, 0.1
    %v509 = vsub.f32 %v439, 0.1
    %v510 = vsub.f32 %v440, 0.1
    %v511 = vsel %vm503, 5.0, %v507
    %v512 = vsel %vm504, 5.0, %v508
    %v513 = vsel %vm505, 5.0, %v509
    %v514 = vsel %vm506, 5.0, %v510
    %v515 = vsel %vm503, -65.0, %v499
    %v516 = vsel %vm504, -65.0, %v500
    %v517 = vsel %vm505, -65.0, %v501
    %v518 = vsel %vm506, -65.0, %v502
    %v519 = vmul.f32 %v449, 0.99004984
    %v520 = vmul.f32 %v450, 0.99004984
    %v521 = vmul.f32 %v451, 0.99004984
    %v522 = vmul.f32 %v452, 0.99004984
    %v523 = vsel %vm503, 1.0, %v519
    %v524 = vsel %vm504, 1.0, %v520
    %v525 = vsel %vm505, 1.0, %v521
    %v526 = vsel %vm506, 1.0, %v522
    %v527 = vsel %vm503, 1, 0
    %v528 = vsel %vm504, 1, 0
    %v529 = vsel %vm505, 1, 0
    %v530 = vsel %vm506, 1, 0
    %v531 = vcvt.s32.f32 %v527
    %v532 = vcvt.s32.f32 %v528
    %v533 = vcvt.s32.f32 %v529
    %v534 = vcvt.s32.f32 %v530
    %s535 = scalar_lea.vmem [#allocation8], 160
    %536 = vst [vmem:[%s535] sm:$0xff] %v531
    %537 = vst [vmem:[%s535 + $0x8] sm:$0xff] %v532
    %538 = vst [vmem:[%s535 + $0x10] sm:$0xff] %v533
    %539 = vst [vmem:[%s535 + $0x18] sm:$0xff] %v534
    %s540 = scalar_lea.vmem [#allocation2], 192
    %v541 = vld [vmem:[%s540] sm:$0xff]
    %v542 = vld [vmem:[%s540 + $0x8] sm:$0xff]
    %v543 = vld [vmem:[%s540 + $0x10] sm:$0xff]
    %v544 = vld [vmem:[%s540 + $0x18] sm:$0xff]
    %v545 = vsub.f32 %v515, -65.0
    %v546 = vsub.f32 %v516, -65.0
    %v547 = vsub.f32 %v517, -65.0
    %v548 = vsub.f32 %v518, -65.0
    %v549 = vmul.f32 %v545, 0.9990005
    %v550 = vmul.f32 %v546, 0.9990005
    %v551 = vmul.f32 %v547, 0.9990005
    %v552 = vmul.f32 %v548, 0.9990005
    %v553 = vadd.f32 %v549, -65.0
    %v554 = vadd.f32 %v550, -65.0
    %v555 = vadd.f32 %v551, -65.0
    %v556 = vadd.f32 %v552, -65.0
    %v557 = vmul.f32 %v487, 0.95122945
    %v558 = vmul.f32 %v488, 0.95122945
    %v559 = vmul.f32 %v489, 0.95122945
    %v560 = vmul.f32 %v490, 0.95122945
    %v561 = vadd.f32 %v557, %v541
    %v562 = vadd.f32 %v558, %v542
    %v563 = vadd.f32 %v559, %v543
    %v564 = vadd.f32 %v560, %v544
    %vm565 = vcmp.le.f32.partialorder %v511, 0.0
    %vm566 = vcmp.le.f32.partialorder %v512, 0.0
    %vm567 = vcmp.le.f32.partialorder %v513, 0.0
    %vm568 = vcmp.le.f32.partialorder %v514, 0.0
    %v569 = vadd.f32 %v553, %v561
    %v570 = vadd.f32 %v554, %v562
    %v571 = vadd.f32 %v555, %v563
    %v572 = vadd.f32 %v556, %v564
    %v573 = vsel %vm565, %v569, %v553
    %v574 = vsel %vm566, %v570, %v554
    %v575 = vsel %vm567, %v571, %v555
    %v576 = vsel %vm568, %v572, %v556
    %vm577 = vcmp.ge.f32.partialorder %v573, -52.0
    %vm578 = vcmp.ge.f32.partialorder %v574, -52.0
    %vm579 = vcmp.ge.f32.partialorder %v575, -52.0
    %vm580 = vcmp.ge.f32.partialorder %v576, -52.0
    %v581 = vsub.f32 %v511, 0.1
    %v582 = vsub.f32 %v512, 0.1
    %v583 = vsub.f32 %v513, 0.1
    %v584 = vsub.f32 %v514, 0.1
    %v585 = vsel %vm577, 5.0, %v581
    %v586 = vsel %vm578, 5.0, %v582
    %v587 = vsel %vm579, 5.0, %v583
    %v588 = vsel %vm580, 5.0, %v584
    %v589 = vsel %vm577, -65.0, %v573
    %v590 = vsel %vm578, -65.0, %v574
    %v591 = vsel %vm579, -65.0, %v575
    %v592 = vsel %vm580, -65.0, %v576
    %v593 = vmul.f32 %v523, 0.99004984
    %v594 = vmul.f32 %v524, 0.99004984
    %v595 = vmul.f32 %v525, 0.99004984
    %v596 = vmul.f32 %v526, 0.99004984
    %v597 = vsel %vm577, 1.0, %v593
    %v598 = vsel %vm578, 1.0, %v594
    %v599 = vsel %vm579, 1.0, %v595
    %v600 = vsel %vm580, 1.0, %v596
    %v601 = vsel %vm577, 1, 0
    %v602 = vsel %vm578, 1, 0
    %v603 = vsel %vm579, 1, 0
    %v604 = vsel %vm580, 1, 0
    %v605 = vcvt.s32.f32 %v601
    %v606 = vcvt.s32.f32 %v602
    %v607 = vcvt.s32.f32 %v603
    %v608 = vcvt.s32.f32 %v604
    %s609 = scalar_lea.vmem [#allocation8], 192
    %610 = vst [vmem:[%s609] sm:$0xff] %v605
    %611 = vst [vmem:[%s609 + $0x8] sm:$0xff] %v606
    %612 = vst [vmem:[%s609 + $0x10] sm:$0xff] %v607
    %613 = vst [vmem:[%s609 + $0x18] sm:$0xff] %v608
    %s614 = scalar_lea.vmem [#allocation2], 224
    %v615 = vld [vmem:[%s614] sm:$0xff]
    %v616 = vld [vmem:[%s614 + $0x8] sm:$0xff]
    %v617 = vld [vmem:[%s614 + $0x10] sm:$0xff]
    %v618 = vld [vmem:[%s614 + $0x18] sm:$0xff]
    %v619 = vsub.f32 %v589, -65.0
    %v620 = vsub.f32 %v590, -65.0
    %v621 = vsub.f32 %v591, -65.0
    %v622 = vsub.f32 %v592, -65.0
    %v623 = vmul.f32 %v619, 0.9990005
    %v624 = vmul.f32 %v620, 0.9990005
    %v625 = vmul.f32 %v621, 0.9990005
    %v626 = vmul.f32 %v622, 0.9990005
    %v627 = vadd.f32 %v623, -65.0
    %v628 = vadd.f32 %v624, -65.0
    %v629 = vadd.f32 %v625, -65.0
    %v630 = vadd.f32 %v626, -65.0
    %v631 = vmul.f32 %v561, 0.95122945
    %v632 = vmul.f32 %v562, 0.95122945
    %v633 = vmul.f32 %v563, 0.95122945
    %v634 = vmul.f32 %v564, 0.95122945
    %v635 = vadd.f32 %v631, %v615
    %v636 = vadd.f32 %v632, %v616
    %v637 = vadd.f32 %v633, %v617
    %v638 = vadd.f32 %v634, %v618
    %vm639 = vcmp.le.f32.partialorder %v585, 0.0
    %vm640 = vcmp.le.f32.partialorder %v586, 0.0
    %vm641 = vcmp.le.f32.partialorder %v587, 0.0
    %vm642 = vcmp.le.f32.partialorder %v588, 0.0
    %v643 = vadd.f32 %v627, %v635
    %v644 = vadd.f32 %v628, %v636
    %v645 = vadd.f32 %v629, %v637
    %v646 = vadd.f32 %v630, %v638
    %v647 = vsel %vm639, %v643, %v627
    %v648 = vsel %vm640, %v644, %v628
    %v649 = vsel %vm641, %v645, %v629
    %v650 = vsel %vm642, %v646, %v630
    %vm651 = vcmp.ge.f32.partialorder %v647, -52.0
    %vm652 = vcmp.ge.f32.partialorder %v648, -52.0
    %vm653 = vcmp.ge.f32.partialorder %v649, -52.0
    %vm654 = vcmp.ge.f32.partialorder %v650, -52.0
    %v655 = vsub.f32 %v585, 0.1
    %v656 = vsub.f32 %v586, 0.1
    %v657 = vsub.f32 %v587, 0.1
    %v658 = vsub.f32 %v588, 0.1
    %v659 = vsel %vm651, 5.0, %v655
    %v660 = vsel %vm652, 5.0, %v656
    %v661 = vsel %vm653, 5.0, %v657
    %v662 = vsel %vm654, 5.0, %v658
    %v663 = vsel %vm651, -65.0, %v647
    %v664 = vsel %vm652, -65.0, %v648
    %v665 = vsel %vm653, -65.0, %v649
    %v666 = vsel %vm654, -65.0, %v650
    %v667 = vmul.f32 %v597, 0.99004984
    %v668 = vmul.f32 %v598, 0.99004984
    %v669 = vmul.f32 %v599, 0.99004984
    %v670 = vmul.f32 %v600, 0.99004984
    %v671 = vsel %vm651, 1.0, %v667
    %v672 = vsel %vm652, 1.0, %v668
    %v673 = vsel %vm653, 1.0, %v669
    %v674 = vsel %vm654, 1.0, %v670
    %v675 = vsel %vm651, 1, 0
    %v676 = vsel %vm652, 1, 0
    %v677 = vsel %vm653, 1, 0
    %v678 = vsel %vm654, 1, 0
    %v679 = vcvt.s32.f32 %v675
    %v680 = vcvt.s32.f32 %v676
    %v681 = vcvt.s32.f32 %v677
    %v682 = vcvt.s32.f32 %v678
    %s683 = scalar_lea.vmem [#allocation8], 224
    %684 = vst [vmem:[%s683] sm:$0xff] %v679
    %685 = vst [vmem:[%s683 + $0x8] sm:$0xff] %v680
    %686 = vst [vmem:[%s683 + $0x10] sm:$0xff] %v681
    %687 = vst [vmem:[%s683 + $0x18] sm:$0xff] %v682
    %s688 = scalar_lea.vmem [#allocation2], 256
    %v689 = vld [vmem:[%s688] sm:$0xff]
    %v690 = vld [vmem:[%s688 + $0x8] sm:$0xff]
    %v691 = vld [vmem:[%s688 + $0x10] sm:$0xff]
    %v692 = vld [vmem:[%s688 + $0x18] sm:$0xff]
    %v693 = vsub.f32 %v663, -65.0
    %v694 = vsub.f32 %v664, -65.0
    %v695 = vsub.f32 %v665, -65.0
    %v696 = vsub.f32 %v666, -65.0
    %v697 = vmul.f32 %v693, 0.9990005
    %v698 = vmul.f32 %v694, 0.9990005
    %v699 = vmul.f32 %v695, 0.9990005
    %v700 = vmul.f32 %v696, 0.9990005
    %v701 = vadd.f32 %v697, -65.0
    %v702 = vadd.f32 %v698, -65.0
    %v703 = vadd.f32 %v699, -65.0
    %v704 = vadd.f32 %v700, -65.0
    %v705 = vmul.f32 %v635, 0.95122945
    %v706 = vmul.f32 %v636, 0.95122945
    %v707 = vmul.f32 %v637, 0.95122945
    %v708 = vmul.f32 %v638, 0.95122945
    %v709 = vadd.f32 %v705, %v689
    %v710 = vadd.f32 %v706, %v690
    %v711 = vadd.f32 %v707, %v691
    %v712 = vadd.f32 %v708, %v692
    %vm713 = vcmp.le.f32.partialorder %v659, 0.0
    %vm714 = vcmp.le.f32.partialorder %v660, 0.0
    %vm715 = vcmp.le.f32.partialorder %v661, 0.0
    %vm716 = vcmp.le.f32.partialorder %v662, 0.0
    %v717 = vadd.f32 %v701, %v709
    %v718 = vadd.f32 %v702, %v710
    %v719 = vadd.f32 %v703, %v711
    %v720 = vadd.f32 %v704, %v712
    %v721 = vsel %vm713, %v717, %v701
    %v722 = vsel %vm714, %v718, %v702
    %v723 = vsel %vm715, %v719, %v703
    %v724 = vsel %vm716, %v720, %v704
    %vm725 = vcmp.ge.f32.partialorder %v721, -52.0
    %vm726 = vcmp.ge.f32.partialorder %v722, -52.0
    %vm727 = vcmp.ge.f32.partialorder %v723, -52.0
    %vm728 = vcmp.ge.f32.partialorder %v724, -52.0
    %v729 = vsub.f32 %v659, 0.1
    %v730 = vsub.f32 %v660, 0.1
    %v731 = vsub.f32 %v661, 0.1
    %v732 = vsub.f32 %v662, 0.1
    %v733 = vsel %vm725, 5.0, %v729
    %v734 = vsel %vm726, 5.0, %v730
    %v735 = vsel %vm727, 5.0, %v731
    %v736 = vsel %vm728, 5.0, %v732
    %v737 = vsel %vm725, -65.0, %v721
    %v738 = vsel %vm726, -65.0, %v722
    %v739 = vsel %vm727, -65.0, %v723
    %v740 = vsel %vm728, -65.0, %v724
    %v741 = vmul.f32 %v671, 0.99004984
    %v742 = vmul.f32 %v672, 0.99004984
    %v743 = vmul.f32 %v673, 0.99004984
    %v744 = vmul.f32 %v674, 0.99004984
    %v745 = vsel %vm725, 1.0, %v741
    %v746 = vsel %vm726, 1.0, %v742
    %v747 = vsel %vm727, 1.0, %v743
    %v748 = vsel %vm728, 1.0, %v744
    %v749 = vsel %vm725, 1, 0
    %v750 = vsel %vm726, 1, 0
    %v751 = vsel %vm727, 1, 0
    %v752 = vsel %vm728, 1, 0
    %v753 = vcvt.s32.f32 %v749
    %v754 = vcvt.s32.f32 %v750
    %v755 = vcvt.s32.f32 %v751
    %v756 = vcvt.s32.f32 %v752
    %s757 = scalar_lea.vmem [#allocation8], 256
    %758 = vst [vmem:[%s757] sm:$0xff] %v753
    %759 = vst [vmem:[%s757 + $0x8] sm:$0xff] %v754
    %760 = vst [vmem:[%s757 + $0x10] sm:$0xff] %v755
    %761 = vst [vmem:[%s757 + $0x18] sm:$0xff] %v756
    %s762 = scalar_lea.vmem [#allocation2], 288
    %v763 = vld [vmem:[%s762] sm:$0xff]
    %v764 = vld [vmem:[%s762 + $0x8] sm:$0xff]
    %v765 = vld [vmem:[%s762 + $0x10] sm:$0xff]
    %v766 = vld [vmem:[%s762 + $0x18] sm:$0xff]
    %v767 = vsub.f32 %v737, -65.0
    %v768 = vsub.f32 %v738, -65.0
    %v769 = vsub.f32 %v739, -65.0
    %v770 = vsub.f32 %v740, -65.0
    %v771 = vmul.f32 %v767, 0.9990005
    %v772 = vmul.f32 %v768, 0.9990005
    %v773 = vmul.f32 %v769, 0.9990005
    %v774 = vmul.f32 %v770, 0.9990005
    %v775 = vadd.f32 %v771, -65.0
    %v776 = vadd.f32 %v772, -65.0
    %v777 = vadd.f32 %v773, -65.0
    %v778 = vadd.f32 %v774, -65.0
    %v779 = vmul.f32 %v709, 0.95122945
    %v780 = vmul.f32 %v710, 0.95122945
    %v781 = vmul.f32 %v711, 0.95122945
    %v782 = vmul.f32 %v712, 0.95122945
    %v783 = vadd.f32 %v779, %v763
    %v784 = vadd.f32 %v780, %v764
    %v785 = vadd.f32 %v781, %v765
    %v786 = vadd.f32 %v782, %v766
    %vm787 = vcmp.le.f32.partialorder %v733, 0.0
    %vm788 = vcmp.le.f32.partialorder %v734, 0.0
    %vm789 = vcmp.le.f32.partialorder %v735, 0.0
    %vm790 = vcmp.le.f32.partialorder %v736, 0.0
    %v791 = vadd.f32 %v775, %v783
    %v792 = vadd.f32 %v776, %v784
    %v793 = vadd.f32 %v777, %v785
    %v794 = vadd.f32 %v778, %v786
    %v795 = vsel %vm787, %v791, %v775
    %v796 = vsel %vm788, %v792, %v776
    %v797 = vsel %vm789, %v793, %v777
    %v798 = vsel %vm790, %v794, %v778
    %vm799 = vcmp.ge.f32.partialorder %v795, -52.0
    %vm800 = vcmp.ge.f32.partialorder %v796, -52.0
    %vm801 = vcmp.ge.f32.partialorder %v797, -52.0
    %vm802 = vcmp.ge.f32.partialorder %v798, -52.0
    %v803 = vsub.f32 %v733, 0.1
    %v804 = vsub.f32 %v734, 0.1
    %v805 = vsub.f32 %v735, 0.1
    %v806 = vsub.f32 %v736, 0.1
    %v807 = vsel %vm799, 5.0, %v803
    %v808 = vsel %vm800, 5.0, %v804
    %v809 = vsel %vm801, 5.0, %v805
    %v810 = vsel %vm802, 5.0, %v806
    %v811 = vsel %vm799, -65.0, %v795
    %v812 = vsel %vm800, -65.0, %v796
    %v813 = vsel %vm801, -65.0, %v797
    %v814 = vsel %vm802, -65.0, %v798
    %v815 = vmul.f32 %v745, 0.99004984
    %v816 = vmul.f32 %v746, 0.99004984
    %v817 = vmul.f32 %v747, 0.99004984
    %v818 = vmul.f32 %v748, 0.99004984
    %v819 = vsel %vm799, 1.0, %v815
    %v820 = vsel %vm800, 1.0, %v816
    %v821 = vsel %vm801, 1.0, %v817
    %v822 = vsel %vm802, 1.0, %v818
    %v823 = vsel %vm799, 1, 0
    %v824 = vsel %vm800, 1, 0
    %v825 = vsel %vm801, 1, 0
    %v826 = vsel %vm802, 1, 0
    %v827 = vcvt.s32.f32 %v823
    %v828 = vcvt.s32.f32 %v824
    %v829 = vcvt.s32.f32 %v825
    %v830 = vcvt.s32.f32 %v826
    %s831 = scalar_lea.vmem [#allocation8], 288
    %832 = vst [vmem:[%s831] sm:$0xff] %v827
    %833 = vst [vmem:[%s831 + $0x8] sm:$0xff] %v828
    %834 = vst [vmem:[%s831 + $0x10] sm:$0xff] %v829
    %835 = vst [vmem:[%s831 + $0x18] sm:$0xff] %v830
    %s836 = scalar_lea.vmem [#allocation2], 320
    %v837 = vld [vmem:[%s836] sm:$0xff]
    %v838 = vld [vmem:[%s836 + $0x8] sm:$0xff]
    %v839 = vld [vmem:[%s836 + $0x10] sm:$0xff]
    %v840 = vld [vmem:[%s836 + $0x18] sm:$0xff]
    %v841 = vsub.f32 %v811, -65.0
    %v842 = vsub.f32 %v812, -65.0
    %v843 = vsub.f32 %v813, -65.0
    %v844 = vsub.f32 %v814, -65.0
    %v845 = vmul.f32 %v841, 0.9990005
    %v846 = vmul.f32 %v842, 0.9990005
    %v847 = vmul.f32 %v843, 0.9990005
    %v848 = vmul.f32 %v844, 0.9990005
    %v849 = vadd.f32 %v845, -65.0
    %v850 = vadd.f32 %v846, -65.0
    %v851 = vadd.f32 %v847, -65.0
    %v852 = vadd.f32 %v848, -65.0
    %v853 = vmul.f32 %v783, 0.95122945
    %v854 = vmul.f32 %v784, 0.95122945
    %v855 = vmul.f32 %v785, 0.95122945
    %v856 = vmul.f32 %v786, 0.95122945
    %v857 = vadd.f32 %v853, %v837
    %v858 = vadd.f32 %v854, %v838
    %v859 = vadd.f32 %v855, %v839
    %v860 = vadd.f32 %v856, %v840
    %vm861 = vcmp.le.f32.partialorder %v807, 0.0
    %vm862 = vcmp.le.f32.partialorder %v808, 0.0
    %vm863 = vcmp.le.f32.partialorder %v809, 0.0
    %vm864 = vcmp.le.f32.partialorder %v810, 0.0
    %v865 = vadd.f32 %v849, %v857
    %v866 = vadd.f32 %v850, %v858
    %v867 = vadd.f32 %v851, %v859
    %v868 = vadd.f32 %v852, %v860
    %v869 = vsel %vm861, %v865, %v849
    %v870 = vsel %vm862, %v866, %v850
    %v871 = vsel %vm863, %v867, %v851
    %v872 = vsel %vm864, %v868, %v852
    %vm873 = vcmp.ge.f32.partialorder %v869, -52.0
    %vm874 = vcmp.ge.f32.partialorder %v870, -52.0
    %vm875 = vcmp.ge.f32.partialorder %v871, -52.0
    %vm876 = vcmp.ge.f32.partialorder %v872, -52.0
    %v877 = vsub.f32 %v807, 0.1
    %v878 = vsub.f32 %v808, 0.1
    %v879 = vsub.f32 %v809, 0.1
    %v880 = vsub.f32 %v810, 0.1
    %v881 = vsel %vm873, 5.0, %v877
    %v882 = vsel %vm874, 5.0, %v878
    %v883 = vsel %vm875, 5.0, %v879
    %v884 = vsel %vm876, 5.0, %v880
    %v885 = vsel %vm873, -65.0, %v869
    %v886 = vsel %vm874, -65.0, %v870
    %v887 = vsel %vm875, -65.0, %v871
    %v888 = vsel %vm876, -65.0, %v872
    %v889 = vmul.f32 %v819, 0.99004984
    %v890 = vmul.f32 %v820, 0.99004984
    %v891 = vmul.f32 %v821, 0.99004984
    %v892 = vmul.f32 %v822, 0.99004984
    %v893 = vsel %vm873, 1.0, %v889
    %v894 = vsel %vm874, 1.0, %v890
    %v895 = vsel %vm875, 1.0, %v891
    %v896 = vsel %vm876, 1.0, %v892
    %v897 = vsel %vm873, 1, 0
    %v898 = vsel %vm874, 1, 0
    %v899 = vsel %vm875, 1, 0
    %v900 = vsel %vm876, 1, 0
    %v901 = vcvt.s32.f32 %v897
    %v902 = vcvt.s32.f32 %v898
    %v903 = vcvt.s32.f32 %v899
    %v904 = vcvt.s32.f32 %v900
    %s905 = scalar_lea.vmem [#allocation8], 320
    %906 = vst [vmem:[%s905] sm:$0xff] %v901
    %907 = vst [vmem:[%s905 + $0x8] sm:$0xff] %v902
    %908 = vst [vmem:[%s905 + $0x10] sm:$0xff] %v903
    %909 = vst [vmem:[%s905 + $0x18] sm:$0xff] %v904
    %s910 = scalar_lea.vmem [#allocation2], 352
    %v911 = vld [vmem:[%s910] sm:$0xff]
    %v912 = vld [vmem:[%s910 + $0x8] sm:$0xff]
    %v913 = vld [vmem:[%s910 + $0x10] sm:$0xff]
    %v914 = vld [vmem:[%s910 + $0x18] sm:$0xff]
    %v915 = vsub.f32 %v885, -65.0
    %v916 = vsub.f32 %v886, -65.0
    %v917 = vsub.f32 %v887, -65.0
    %v918 = vsub.f32 %v888, -65.0
    %v919 = vmul.f32 %v915, 0.9990005
    %v920 = vmul.f32 %v916, 0.9990005
    %v921 = vmul.f32 %v917, 0.9990005
    %v922 = vmul.f32 %v918, 0.9990005
    %v923 = vadd.f32 %v919, -65.0
    %v924 = vadd.f32 %v920, -65.0
    %v925 = vadd.f32 %v921, -65.0
    %v926 = vadd.f32 %v922, -65.0
    %v927 = vmul.f32 %v857, 0.95122945
    %v928 = vmul.f32 %v858, 0.95122945
    %v929 = vmul.f32 %v859, 0.95122945
    %v930 = vmul.f32 %v860, 0.95122945
    %v931 = vadd.f32 %v927, %v911
    %v932 = vadd.f32 %v928, %v912
    %v933 = vadd.f32 %v929, %v913
    %v934 = vadd.f32 %v930, %v914
    %vm935 = vcmp.le.f32.partialorder %v881, 0.0
    %vm936 = vcmp.le.f32.partialorder %v882, 0.0
    %vm937 = vcmp.le.f32.partialorder %v883, 0.0
    %vm938 = vcmp.le.f32.partialorder %v884, 0.0
    %v939 = vadd.f32 %v923, %v931
    %v940 = vadd.f32 %v924, %v932
    %v941 = vadd.f32 %v925, %v933
    %v942 = vadd.f32 %v926, %v934
    %v943 = vsel %vm935, %v939, %v923
    %v944 = vsel %vm936, %v940, %v924
    %v945 = vsel %vm937, %v941, %v925
    %v946 = vsel %vm938, %v942, %v926
    %vm947 = vcmp.ge.f32.partialorder %v943, -52.0
    %vm948 = vcmp.ge.f32.partialorder %v944, -52.0
    %vm949 = vcmp.ge.f32.partialorder %v945, -52.0
    %vm950 = vcmp.ge.f32.partialorder %v946, -52.0
    %v951 = vsub.f32 %v881, 0.1
    %v952 = vsub.f32 %v882, 0.1
    %v953 = vsub.f32 %v883, 0.1
    %v954 = vsub.f32 %v884, 0.1
    %v955 = vsel %vm947, 5.0, %v951
    %v956 = vsel %vm948, 5.0, %v952
    %v957 = vsel %vm949, 5.0, %v953
    %v958 = vsel %vm950, 5.0, %v954
    %v959 = vsel %vm947, -65.0, %v943
    %v960 = vsel %vm948, -65.0, %v944
    %v961 = vsel %vm949, -65.0, %v945
    %v962 = vsel %vm950, -65.0, %v946
    %v963 = vmul.f32 %v893, 0.99004984
    %v964 = vmul.f32 %v894, 0.99004984
    %v965 = vmul.f32 %v895, 0.99004984
    %v966 = vmul.f32 %v896, 0.99004984
    %v967 = vsel %vm947, 1.0, %v963
    %v968 = vsel %vm948, 1.0, %v964
    %v969 = vsel %vm949, 1.0, %v965
    %v970 = vsel %vm950, 1.0, %v966
    %v971 = vsel %vm947, 1, 0
    %v972 = vsel %vm948, 1, 0
    %v973 = vsel %vm949, 1, 0
    %v974 = vsel %vm950, 1, 0
    %v975 = vcvt.s32.f32 %v971
    %v976 = vcvt.s32.f32 %v972
    %v977 = vcvt.s32.f32 %v973
    %v978 = vcvt.s32.f32 %v974
    %s979 = scalar_lea.vmem [#allocation8], 352
    %980 = vst [vmem:[%s979] sm:$0xff] %v975
    %981 = vst [vmem:[%s979 + $0x8] sm:$0xff] %v976
    %982 = vst [vmem:[%s979 + $0x10] sm:$0xff] %v977
    %983 = vst [vmem:[%s979 + $0x18] sm:$0xff] %v978
    %s984 = scalar_lea.vmem [#allocation2], 384
    %v985 = vld [vmem:[%s984] sm:$0xff]
    %v986 = vld [vmem:[%s984 + $0x8] sm:$0xff]
    %v987 = vld [vmem:[%s984 + $0x10] sm:$0xff]
    %v988 = vld [vmem:[%s984 + $0x18] sm:$0xff]
    %v989 = vsub.f32 %v959, -65.0
    %v990 = vsub.f32 %v960, -65.0
    %v991 = vsub.f32 %v961, -65.0
    %v992 = vsub.f32 %v962, -65.0
    %v993 = vmul.f32 %v989, 0.9990005
    %v994 = vmul.f32 %v990, 0.9990005
    %v995 = vmul.f32 %v991, 0.9990005
    %v996 = vmul.f32 %v992, 0.9990005
    %v997 = vadd.f32 %v993, -65.0
    %v998 = vadd.f32 %v994, -65.0
    %v999 = vadd.f32 %v995, -65.0
    %v1000 = vadd.f32 %v996, -65.0
    %v1001 = vmul.f32 %v931, 0.95122945
    %v1002 = vmul.f32 %v932, 0.95122945
    %v1003 = vmul.f32 %v933, 0.95122945
    %v1004 = vmul.f32 %v934, 0.95122945
    %v1005 = vadd.f32 %v1001, %v985
    %v1006 = vadd.f32 %v1002, %v986
    %v1007 = vadd.f32 %v1003, %v987
    %v1008 = vadd.f32 %v1004, %v988
    %vm1009 = vcmp.le.f32.partialorder %v955, 0.0
    %vm1010 = vcmp.le.f32.partialorder %v956, 0.0
    %vm1011 = vcmp.le.f32.partialorder %v957, 0.0
    %vm1012 = vcmp.le.f32.partialorder %v958, 0.0
    %v1013 = vadd.f32 %v997, %v1005
    %v1014 = vadd.f32 %v998, %v1006
    %v1015 = vadd.f32 %v999, %v1007
    %v1016 = vadd.f32 %v1000, %v1008
    %v1017 = vsel %vm1009, %v1013, %v997
    %v1018 = vsel %vm1010, %v1014, %v998
    %v1019 = vsel %vm1011, %v1015, %v999
    %v1020 = vsel %vm1012, %v1016, %v1000
    %vm1021 = vcmp.ge.f32.partialorder %v1017, -52.0
    %vm1022 = vcmp.ge.f32.partialorder %v1018, -52.0
    %vm1023 = vcmp.ge.f32.partialorder %v1019, -52.0
    %vm1024 = vcmp.ge.f32.partialorder %v1020, -52.0
    %v1025 = vsub.f32 %v955, 0.1
    %v1026 = vsub.f32 %v956, 0.1
    %v1027 = vsub.f32 %v957, 0.1
    %v1028 = vsub.f32 %v958, 0.1
    %v1029 = vsel %vm1021, 5.0, %v1025
    %v1030 = vsel %vm1022, 5.0, %v1026
    %v1031 = vsel %vm1023, 5.0, %v1027
    %v1032 = vsel %vm1024, 5.0, %v1028
    %v1033 = vsel %vm1021, -65.0, %v1017
    %v1034 = vsel %vm1022, -65.0, %v1018
    %v1035 = vsel %vm1023, -65.0, %v1019
    %v1036 = vsel %vm1024, -65.0, %v1020
    %v1037 = vmul.f32 %v967, 0.99004984
    %v1038 = vmul.f32 %v968, 0.99004984
    %v1039 = vmul.f32 %v969, 0.99004984
    %v1040 = vmul.f32 %v970, 0.99004984
    %v1041 = vsel %vm1021, 1.0, %v1037
    %v1042 = vsel %vm1022, 1.0, %v1038
    %v1043 = vsel %vm1023, 1.0, %v1039
    %v1044 = vsel %vm1024, 1.0, %v1040
    %v1045 = vsel %vm1021, 1, 0
    %v1046 = vsel %vm1022, 1, 0
    %v1047 = vsel %vm1023, 1, 0
    %v1048 = vsel %vm1024, 1, 0
    %v1049 = vcvt.s32.f32 %v1045
    %v1050 = vcvt.s32.f32 %v1046
    %v1051 = vcvt.s32.f32 %v1047
    %v1052 = vcvt.s32.f32 %v1048
    %s1053 = scalar_lea.vmem [#allocation8], 384
    %1054 = vst [vmem:[%s1053] sm:$0xff] %v1049
    %1055 = vst [vmem:[%s1053 + $0x8] sm:$0xff] %v1050
    %1056 = vst [vmem:[%s1053 + $0x10] sm:$0xff] %v1051
    %1057 = vst [vmem:[%s1053 + $0x18] sm:$0xff] %v1052
    %s1058 = scalar_lea.vmem [#allocation2], 416
    %v1059 = vld [vmem:[%s1058] sm:$0xff]
    %v1060 = vld [vmem:[%s1058 + $0x8] sm:$0xff]
    %v1061 = vld [vmem:[%s1058 + $0x10] sm:$0xff]
    %v1062 = vld [vmem:[%s1058 + $0x18] sm:$0xff]
    %v1063 = vsub.f32 %v1033, -65.0
    %v1064 = vsub.f32 %v1034, -65.0
    %v1065 = vsub.f32 %v1035, -65.0
    %v1066 = vsub.f32 %v1036, -65.0
    %v1067 = vmul.f32 %v1063, 0.9990005
    %v1068 = vmul.f32 %v1064, 0.9990005
    %v1069 = vmul.f32 %v1065, 0.9990005
    %v1070 = vmul.f32 %v1066, 0.9990005
    %v1071 = vadd.f32 %v1067, -65.0
    %v1072 = vadd.f32 %v1068, -65.0
    %v1073 = vadd.f32 %v1069, -65.0
    %v1074 = vadd.f32 %v1070, -65.0
    %v1075 = vmul.f32 %v1005, 0.95122945
    %v1076 = vmul.f32 %v1006, 0.95122945
    %v1077 = vmul.f32 %v1007, 0.95122945
    %v1078 = vmul.f32 %v1008, 0.95122945
    %v1079 = vadd.f32 %v1075, %v1059
    %v1080 = vadd.f32 %v1076, %v1060
    %v1081 = vadd.f32 %v1077, %v1061
    %v1082 = vadd.f32 %v1078, %v1062
    %vm1083 = vcmp.le.f32.partialorder %v1029, 0.0
    %vm1084 = vcmp.le.f32.partialorder %v1030, 0.0
    %vm1085 = vcmp.le.f32.partialorder %v1031, 0.0
    %vm1086 = vcmp.le.f32.partialorder %v1032, 0.0
    %v1087 = vadd.f32 %v1071, %v1079
    %v1088 = vadd.f32 %v1072, %v1080
    %v1089 = vadd.f32 %v1073, %v1081
    %v1090 = vadd.f32 %v1074, %v1082
    %v1091 = vsel %vm1083, %v1087, %v1071
    %v1092 = vsel %vm1084, %v1088, %v1072
    %v1093 = vsel %vm1085, %v1089, %v1073
    %v1094 = vsel %vm1086, %v1090, %v1074
    %vm1095 = vcmp.ge.f32.partialorder %v1091, -52.0
    %vm1096 = vcmp.ge.f32.partialorder %v1092, -52.0
    %vm1097 = vcmp.ge.f32.partialorder %v1093, -52.0
    %vm1098 = vcmp.ge.f32.partialorder %v1094, -52.0
    %v1099 = vsub.f32 %v1029, 0.1
    %v1100 = vsub.f32 %v1030, 0.1
    %v1101 = vsub.f32 %v1031, 0.1
    %v1102 = vsub.f32 %v1032, 0.1
    %v1103 = vsel %vm1095, 5.0, %v1099
    %v1104 = vsel %vm1096, 5.0, %v1100
    %v1105 = vsel %vm1097, 5.0, %v1101
    %v1106 = vsel %vm1098, 5.0, %v1102
    %v1107 = vsel %vm1095, -65.0, %v1091
    %v1108 = vsel %vm1096, -65.0, %v1092
    %v1109 = vsel %vm1097, -65.0, %v1093
    %v1110 = vsel %vm1098, -65.0, %v1094
    %v1111 = vmul.f32 %v1041, 0.99004984
    %v1112 = vmul.f32 %v1042, 0.99004984
    %v1113 = vmul.f32 %v1043, 0.99004984
    %v1114 = vmul.f32 %v1044, 0.99004984
    %v1115 = vsel %vm1095, 1.0, %v1111
    %v1116 = vsel %vm1096, 1.0, %v1112
    %v1117 = vsel %vm1097, 1.0, %v1113
    %v1118 = vsel %vm1098, 1.0, %v1114
    %v1119 = vsel %vm1095, 1, 0
    %v1120 = vsel %vm1096, 1, 0
    %v1121 = vsel %vm1097, 1, 0
    %v1122 = vsel %vm1098, 1, 0
    %v1123 = vcvt.s32.f32 %v1119
    %v1124 = vcvt.s32.f32 %v1120
    %v1125 = vcvt.s32.f32 %v1121
    %v1126 = vcvt.s32.f32 %v1122
    %s1127 = scalar_lea.vmem [#allocation8], 416
    %1128 = vst [vmem:[%s1127] sm:$0xff] %v1123
    %1129 = vst [vmem:[%s1127 + $0x8] sm:$0xff] %v1124
    %1130 = vst [vmem:[%s1127 + $0x10] sm:$0xff] %v1125
    %1131 = vst [vmem:[%s1127 + $0x18] sm:$0xff] %v1126
    %s1132 = scalar_lea.vmem [#allocation2], 448
    %v1133 = vld [vmem:[%s1132] sm:$0xff]
    %v1134 = vld [vmem:[%s1132 + $0x8] sm:$0xff]
    %v1135 = vld [vmem:[%s1132 + $0x10] sm:$0xff]
    %v1136 = vld [vmem:[%s1132 + $0x18] sm:$0xff]
    %v1137 = vsub.f32 %v1107, -65.0
    %v1138 = vsub.f32 %v1108, -65.0
    %v1139 = vsub.f32 %v1109, -65.0
    %v1140 = vsub.f32 %v1110, -65.0
    %v1141 = vmul.f32 %v1137, 0.9990005
    %v1142 = vmul.f32 %v1138, 0.9990005
    %v1143 = vmul.f32 %v1139, 0.9990005
    %v1144 = vmul.f32 %v1140, 0.9990005
    %v1145 = vadd.f32 %v1141, -65.0
    %v1146 = vadd.f32 %v1142, -65.0
    %v1147 = vadd.f32 %v1143, -65.0
    %v1148 = vadd.f32 %v1144, -65.0
    %v1149 = vmul.f32 %v1079, 0.95122945
    %v1150 = vmul.f32 %v1080, 0.95122945
    %v1151 = vmul.f32 %v1081, 0.95122945
    %v1152 = vmul.f32 %v1082, 0.95122945
    %v1153 = vadd.f32 %v1149, %v1133
    %v1154 = vadd.f32 %v1150, %v1134
    %v1155 = vadd.f32 %v1151, %v1135
    %v1156 = vadd.f32 %v1152, %v1136
    %vm1157 = vcmp.le.f32.partialorder %v1103, 0.0
    %vm1158 = vcmp.le.f32.partialorder %v1104, 0.0
    %vm1159 = vcmp.le.f32.partialorder %v1105, 0.0
    %vm1160 = vcmp.le.f32.partialorder %v1106, 0.0
    %v1161 = vadd.f32 %v1145, %v1153
    %v1162 = vadd.f32 %v1146, %v1154
    %v1163 = vadd.f32 %v1147, %v1155
    %v1164 = vadd.f32 %v1148, %v1156
    %v1165 = vsel %vm1157, %v1161, %v1145
    %v1166 = vsel %vm1158, %v1162, %v1146
    %v1167 = vsel %vm1159, %v1163, %v1147
    %v1168 = vsel %vm1160, %v1164, %v1148
    %vm1169 = vcmp.ge.f32.partialorder %v1165, -52.0
    %vm1170 = vcmp.ge.f32.partialorder %v1166, -52.0
    %vm1171 = vcmp.ge.f32.partialorder %v1167, -52.0
    %vm1172 = vcmp.ge.f32.partialorder %v1168, -52.0
    %v1173 = vsub.f32 %v1103, 0.1
    %v1174 = vsub.f32 %v1104, 0.1
    %v1175 = vsub.f32 %v1105, 0.1
    %v1176 = vsub.f32 %v1106, 0.1
    %v1177 = vsel %vm1169, 5.0, %v1173
    %v1178 = vsel %vm1170, 5.0, %v1174
    %v1179 = vsel %vm1171, 5.0, %v1175
    %v1180 = vsel %vm1172, 5.0, %v1176
    %v1181 = vsel %vm1169, -65.0, %v1165
    %v1182 = vsel %vm1170, -65.0, %v1166
    %v1183 = vsel %vm1171, -65.0, %v1167
    %v1184 = vsel %vm1172, -65.0, %v1168
    %v1185 = vmul.f32 %v1115, 0.99004984
    %v1186 = vmul.f32 %v1116, 0.99004984
    %v1187 = vmul.f32 %v1117, 0.99004984
    %v1188 = vmul.f32 %v1118, 0.99004984
    %v1189 = vsel %vm1169, 1.0, %v1185
    %v1190 = vsel %vm1170, 1.0, %v1186
    %v1191 = vsel %vm1171, 1.0, %v1187
    %v1192 = vsel %vm1172, 1.0, %v1188
    %v1193 = vsel %vm1169, 1, 0
    %v1194 = vsel %vm1170, 1, 0
    %v1195 = vsel %vm1171, 1, 0
    %v1196 = vsel %vm1172, 1, 0
    %v1197 = vcvt.s32.f32 %v1193
    %v1198 = vcvt.s32.f32 %v1194
    %v1199 = vcvt.s32.f32 %v1195
    %v1200 = vcvt.s32.f32 %v1196
    %s1201 = scalar_lea.vmem [#allocation8], 448
    %1202 = vst [vmem:[%s1201] sm:$0xff] %v1197
    %1203 = vst [vmem:[%s1201 + $0x8] sm:$0xff] %v1198
    %1204 = vst [vmem:[%s1201 + $0x10] sm:$0xff] %v1199
    %1205 = vst [vmem:[%s1201 + $0x18] sm:$0xff] %v1200
    %s1206 = scalar_lea.vmem [#allocation2], 480
    %v1207 = vld [vmem:[%s1206] sm:$0xff]
    %v1208 = vld [vmem:[%s1206 + $0x8] sm:$0xff]
    %v1209 = vld [vmem:[%s1206 + $0x10] sm:$0xff]
    %v1210 = vld [vmem:[%s1206 + $0x18] sm:$0xff]
    %v1211 = vsub.f32 %v1181, -65.0
    %v1212 = vsub.f32 %v1182, -65.0
    %v1213 = vsub.f32 %v1183, -65.0
    %v1214 = vsub.f32 %v1184, -65.0
    %v1215 = vmul.f32 %v1211, 0.9990005
    %v1216 = vmul.f32 %v1212, 0.9990005
    %v1217 = vmul.f32 %v1213, 0.9990005
    %v1218 = vmul.f32 %v1214, 0.9990005
    %v1219 = vadd.f32 %v1215, -65.0
    %v1220 = vadd.f32 %v1216, -65.0
    %v1221 = vadd.f32 %v1217, -65.0
    %v1222 = vadd.f32 %v1218, -65.0
    %v1223 = vmul.f32 %v1153, 0.95122945
    %v1224 = vmul.f32 %v1154, 0.95122945
    %v1225 = vmul.f32 %v1155, 0.95122945
    %v1226 = vmul.f32 %v1156, 0.95122945
    %v1227 = vadd.f32 %v1223, %v1207
    %v1228 = vadd.f32 %v1224, %v1208
    %v1229 = vadd.f32 %v1225, %v1209
    %v1230 = vadd.f32 %v1226, %v1210
    %vm1231 = vcmp.le.f32.partialorder %v1177, 0.0
    %vm1232 = vcmp.le.f32.partialorder %v1178, 0.0
    %vm1233 = vcmp.le.f32.partialorder %v1179, 0.0
    %vm1234 = vcmp.le.f32.partialorder %v1180, 0.0
    %v1235 = vadd.f32 %v1219, %v1227
    %v1236 = vadd.f32 %v1220, %v1228
    %v1237 = vadd.f32 %v1221, %v1229
    %v1238 = vadd.f32 %v1222, %v1230
    %v1239 = vsel %vm1231, %v1235, %v1219
    %v1240 = vsel %vm1232, %v1236, %v1220
    %v1241 = vsel %vm1233, %v1237, %v1221
    %v1242 = vsel %vm1234, %v1238, %v1222
    %vm1243 = vcmp.ge.f32.partialorder %v1239, -52.0
    %vm1244 = vcmp.ge.f32.partialorder %v1240, -52.0
    %vm1245 = vcmp.ge.f32.partialorder %v1241, -52.0
    %vm1246 = vcmp.ge.f32.partialorder %v1242, -52.0
    %v1247 = vsub.f32 %v1177, 0.1
    %v1248 = vsub.f32 %v1178, 0.1
    %v1249 = vsub.f32 %v1179, 0.1
    %v1250 = vsub.f32 %v1180, 0.1
    %v1251 = vsel %vm1243, 5.0, %v1247
    %v1252 = vsel %vm1244, 5.0, %v1248
    %v1253 = vsel %vm1245, 5.0, %v1249
    %v1254 = vsel %vm1246, 5.0, %v1250
    %v1255 = vsel %vm1243, -65.0, %v1239
    %v1256 = vsel %vm1244, -65.0, %v1240
    %v1257 = vsel %vm1245, -65.0, %v1241
    %v1258 = vsel %vm1246, -65.0, %v1242
    %v1259 = vmul.f32 %v1189, 0.99004984
    %v1260 = vmul.f32 %v1190, 0.99004984
    %v1261 = vmul.f32 %v1191, 0.99004984
    %v1262 = vmul.f32 %v1192, 0.99004984
    %v1263 = vsel %vm1243, 1.0, %v1259
    %v1264 = vsel %vm1244, 1.0, %v1260
    %v1265 = vsel %vm1245, 1.0, %v1261
    %v1266 = vsel %vm1246, 1.0, %v1262
    %v1267 = vsel %vm1243, 1, 0
    %v1268 = vsel %vm1244, 1, 0
    %v1269 = vsel %vm1245, 1, 0
    %v1270 = vsel %vm1246, 1, 0
    %v1271 = vcvt.s32.f32 %v1267
    %v1272 = vcvt.s32.f32 %v1268
    %v1273 = vcvt.s32.f32 %v1269
    %v1274 = vcvt.s32.f32 %v1270
    %s1275 = scalar_lea.vmem [#allocation8], 480
    %1276 = vst [vmem:[%s1275] sm:$0xff] %v1271
    %1277 = vst [vmem:[%s1275 + $0x8] sm:$0xff] %v1272
    %1278 = vst [vmem:[%s1275 + $0x10] sm:$0xff] %v1273
    %1279 = vst [vmem:[%s1275 + $0x18] sm:$0xff] %v1274
    %1280 = vst [vmem:[#allocation7] sm:$0xff] %v1255
    %1281 = vst [vmem:[#allocation7 + $0x8] sm:$0xff] %v1256
    %1282 = vst [vmem:[#allocation7 + $0x10] sm:$0xff] %v1257
    %1283 = vst [vmem:[#allocation7 + $0x18] sm:$0xff] %v1258
    %1284 = vst [vmem:[%s83] sm:$0xff] %v1227
    %1285 = vst [vmem:[%s83 + $0x8] sm:$0xff] %v1228
    %1286 = vst [vmem:[%s83 + $0x10] sm:$0xff] %v1229
    %1287 = vst [vmem:[%s83 + $0x18] sm:$0xff] %v1230
    %1288 = vst [vmem:[%s88] sm:$0xff] %v1251
    %1289 = vst [vmem:[%s88 + $0x8] sm:$0xff] %v1252
    %1290 = vst [vmem:[%s88 + $0x10] sm:$0xff] %v1253
    %1291 = vst [vmem:[%s88 + $0x18] sm:$0xff] %v1254
    %1292 = vst [vmem:[%s93] sm:$0xff] %v1263
    %1293 = vst [vmem:[%s93 + $0x8] sm:$0xff] %v1264
    %1294 = vst [vmem:[%s93 + $0x10] sm:$0xff] %v1265
    %1295 = vst [vmem:[%s93 + $0x18] sm:$0xff] %v1266
    // Predicated region
    $region22: #{tpu_custom_call.1} parent=1 // pred_check
      _
    $region23: #{tpu_custom_call.1} parent=1 // pred_check_branch
      %1297 = sbr.rel (0) target = $region25
    $region24: #{tpu_custom_call.1} parent=1 // pred_region
      %s1299 = ssub.s32 2048, 2048
      %1300 = vsyncadd [#allocation4], %s1299
      %s1301 = sshll.u32 [#allocation7], 4
      %s1302 = int_to_ptr.vmem [resolvable:$true] %s1301
      %1307 = dma.vmem_to_hbm [thread:$0]  %s1302, 2048, %s2, [#allocation4], 128, 128, 8
    $region25: #{tpu_custom_call.1} parent=1 // pred_fallthru
      _
    // Predicated region
    $region26: #{tpu_custom_call.1} parent=1 // pred_check
      _
    $region27: #{tpu_custom_call.1} parent=1 // pred_check_branch
      %1309 = sbr.rel (0) target = $region29
    $region28: #{tpu_custom_call.1} parent=1 // pred_region
      %s1311 = ssub.s32 8192, 8192
      %1312 = vsyncadd [#allocation9], %s1311
      %s1313 = sshll.u32 [#allocation8], 4
      %s1314 = int_to_ptr.vmem [resolvable:$true] %s1313
      %1319 = dma.vmem_to_hbm [thread:$0]  %s1314, 8192, %s3, [#allocation9], 128, 128, 8
    $region29: #{tpu_custom_call.1} parent=1 // pred_fallthru
      _
    // Predicated region
    $region30: #{tpu_custom_call.1} parent=1 // pred_check
      _
    $region31: #{tpu_custom_call.1} parent=1 // pred_check_branch
      %1321 = sbr.rel (0) target = $region33
    $region32: #{tpu_custom_call.1} parent=1 // pred_region
      %1322 = dma.done [#allocation4], 2048
    $region33: #{tpu_custom_call.1} parent=1 // pred_fallthru
      _
    // Predicated region
    $region34: #{tpu_custom_call.1} parent=1 // pred_check
      _
    $region35: #{tpu_custom_call.1} parent=1 // pred_check_branch
      %1324 = sbr.rel (0) target = $region37
    $region36: #{tpu_custom_call.1} parent=1 // pred_region
      %1325 = dma.done [#allocation9], 8192
    $region37: #{tpu_custom_call.1} parent=1 // pred_fallthru
      _
    %1326 = vsyncpa [#allocation3], 1
    %1327 = vsyncpa [#allocation6], 1
    %1328 = vsyncpa [#allocation4], 1
    %1329 = vsyncpa [#allocation9], 1

</llo_original>
